<compile_context>
chip_gen: v7x
topology: tpu7x:2x2x1
jax: 0.10.0
libtpu: 0.0.40
codegen_flags: <defaults>
</compile_context>

<pallas_src>
import math

import jax
import jax.numpy as jnp
from jax import lax
from jax.experimental import pallas as pl
from jax.experimental.pallas import tpu as pltpu

NUM_HEADS = 8
LN_EPS = 1e-5


def _layernorm(x, gamma, beta):
    mu = jnp.mean(x, axis=-1, keepdims=True)
    var = jnp.mean((x - mu) ** 2, axis=-1, keepdims=True)
    return (x - mu) * lax.rsqrt(var + LN_EPS) * gamma + beta


def _gelu_exact(x):
    # PyTorch nn.GELU() default is the exact erf form.
    return 0.5 * x * (1.0 + lax.erf(x / math.sqrt(2.0)))


def _make_kernel(S, E):
    H = NUM_HEADS
    dh = E // H
    scale = 1.0 / math.sqrt(dh)

    def kernel(x_ref, wqkv_ref, wo_ref, wf_ref, pool_ref, poolT_ref,
               bqkv_ref, vec_ref, o_ref):
        x = x_ref[...]                                   # (S, E) f32, one sequence
        xm = x.astype(wqkv_ref.dtype)                    # matmul-operand dtype

        # Fused QKV projection: one MXU pass, lane-dense (S, 3E) result.
        qkv = jnp.dot(xm, wqkv_ref[...],
                      preferred_element_type=jnp.float32) + bqkv_ref[...]
        q = qkv[:, 0:E] * scale                          # (S, E)
        k = qkv[:, E:2 * E]                              # (S, E)
        v = qkv[:, 2 * E:3 * E]                          # (S, E)

        # Per-head scores WITHOUT splitting heads off the lane axis:
        #   prod[a, b, e]  = q[a, e] * k[b, e]                       (VPU broadcast mul)
        #   score[a, b, h] = sum_e prod[a, b, e] * pool[e, h]        (32-deep MXU matmul)
        prod = q[:, None, :] * k[None, :, :]             # (S, S, E)
        scores = jnp.dot(prod.reshape(S * S, E), pool_ref[...],
                         preferred_element_type=jnp.float32)         # (S*S, H)
        scores = scores.reshape(S, S, H)                 # [query, key, head]

        # Softmax over the key axis (sublane reduction).
        m = jnp.max(scores, axis=1, keepdims=True)
        p = jnp.exp(scores - m)
        denom = jnp.sum(p, axis=1, keepdims=True)
        # NOTE: pl.reciprocal(denom, approx=True) would move this divide to the EUP
        # slot, but its approximation error risks the 1e-4 reference check; keep exact.
        p = p / denom                                    # (S, S, H)

        # Broadcast per-head probabilities back onto that head's dh lanes
        # (8-deep MXU matmul), then contract over keys with a sublane reduction:
        #   attn[a, e] = sum_b p[a, b, head(e)] * v[b, e]
        p_exp = jnp.dot(p.reshape(S * S, H), poolT_ref[...],
                        preferred_element_type=jnp.float32)           # (S*S, E)
        attn = jnp.sum(p_exp.reshape(S, S, E) * v[None, :, :], axis=1)  # (S, E)

        vecs = vec_ref[...]                              # (6, E): bo g1 be1 bf g2 be2
        bo, g1, be1 = vecs[0:1], vecs[1:2], vecs[2:3]
        bf, g2, be2 = vecs[3:4], vecs[4:5], vecs[5:6]

        # Output projection + residual + LayerNorm1
        attn_out = jnp.dot(attn.astype(wo_ref.dtype), wo_ref[...],
                           preferred_element_type=jnp.float32) + bo
        y = _layernorm(attn_out + x, g1, be1)

        # FC -> Dropout (eval: identity) -> GELU, residual, LayerNorm2
        # TODO(synk): Dropout(p=0.05) omitted (inference-mode identity).
        f = jnp.dot(y.astype(wf_ref.dtype), wf_ref[...],
                    preferred_element_type=jnp.float32) + bf
        f = _gelu_exact(f)
        o_ref[...] = _layernorm(f + y, g2, be2)

    return kernel


def mhsa_forward(x, params, *, matmul_dtype=jnp.float32):
    B, S, E = x.shape
    H = NUM_HEADS
    assert E % H == 0, "embed dim must be divisible by num_heads"
    dh = E // H
    (wq, wk, wv, wo, bq, bk, bv, bo, g1, be1, wf, bf, g2, be2) = params

    # Fused QKV weight / bias packing (one matmul, one bias add in-kernel).
    wqkv = jnp.concatenate([wq, wk, wv], axis=1).astype(matmul_dtype)   # (E, 3E)
    bqkv = jnp.concatenate([bq, bk, bv], axis=1)                        # (1, 3E) f32
    wo_m = wo.astype(matmul_dtype)
    wf_m = wf.astype(matmul_dtype)
    # Remaining small bias / LayerNorm vectors packed into one tile.
    vecs = jnp.concatenate([bo, g1, be1, bf, g2, be2], axis=0)          # (6, E) f32

    # Head-indicator pooling matrices: pool[e, h] = 1 iff lane e belongs to head h.
    head_of_lane = jnp.arange(E, dtype=jnp.int32) // dh
    pool = (head_of_lane[:, None] ==
            jnp.arange(H, dtype=jnp.int32)[None, :]).astype(jnp.float32)  # (E, H)
    poolT = pool.T                                                        # (H, E)

    x2d = x.reshape(B * S, E)
    kernel = _make_kernel(S, E)

    def const2d(shape):
        return pl.BlockSpec(shape, lambda b: (0, 0))

    out2d = pl.pallas_call(
        kernel,
        out_shape=jax.ShapeDtypeStruct((B * S, E), jnp.float32),
        grid_spec=pltpu.PrefetchScalarGridSpec(
            num_scalar_prefetch=0,
            grid=(B,),                                   # one sequence per grid step
            in_specs=[
                pl.BlockSpec((S, E), lambda b: (b, 0)),  # x   (per-batch block)
                const2d((E, 3 * E)),                     # fused QKV weight
                const2d((E, E)),                         # wo
                const2d((E, E)),                         # wf
                const2d((E, H)),                         # head-pool
                const2d((H, E)),                         # head-pool^T
                const2d((1, 3 * E)),                     # fused QKV bias
                const2d((6, E)),                         # packed bo/g1/be1/bf/g2/be2
            ],
            out_specs=pl.BlockSpec((S, E), lambda b: (b, 0)),
        ),
        compiler_params=pltpu.CompilerParams(
            dimension_semantics=("parallel",),           # use 2nd TC on v7x / megacore
            vmem_limit_bytes=32 * 1024 * 1024),
    )(x2d, wqkv, wo_m, wf_m, pool, poolT, bqkv, vecs)

    return out2d.reshape(B, S, E)


def reference_forward(x, params):
    """Pure-JAX reference replicating the PyTorch module (eval mode)."""
    (wq, wk, wv, wo, bq, bk, bv, bo, g1, be1, wf, bf, g2, be2) = params
    B, S, E = x.shape
    dh = E // NUM_HEADS
    scale = 1.0 / math.sqrt(dh)

    q = x @ wq + bq[0]
    k = x @ wk + bk[0]
    v = x @ wv + bv[0]
    q = q.reshape(B, S, NUM_HEADS, dh).transpose(0, 2, 1, 3)
    k = k.reshape(B, S, NUM_HEADS, dh).transpose(0, 2, 1, 3)
    v = v.reshape(B, S, NUM_HEADS, dh).transpose(0, 2, 1, 3)
    s = jnp.einsum('bhqd,bhkd->bhqk', q * scale, k)
    p = jax.nn.softmax(s, axis=-1)
    attn = jnp.einsum('bhqk,bhkd->bhqd', p, v).transpose(0, 2, 1, 3).reshape(B, S, E)
    attn = attn @ wo + bo[0]

    def ln(t, g, b):
        mu = jnp.mean(t, axis=-1, keepdims=True)
        var = jnp.mean((t - mu) ** 2, axis=-1, keepdims=True)
        return (t - mu) / jnp.sqrt(var + LN_EPS) * g[0] + b[0]

    y = ln(attn + x, g1, be1)
    f = _gelu_exact(y @ wf + bf[0])
    return ln(f + y, g2, be2)


def make_params(key, E):
    ks = jax.random.split(key, 6)
    scale = 0.02
    wq = scale * jax.random.normal(ks[0], (E, E), jnp.float32)
    wk = scale * jax.random.normal(ks[1], (E, E), jnp.float32)
    wv = scale * jax.random.normal(ks[2], (E, E), jnp.float32)
    wo = scale * jax.random.normal(ks[3], (E, E), jnp.float32)
    wf = scale * jax.random.normal(ks[4], (E, E), jnp.float32)
    bq = 0.01 * jnp.ones((1, E), jnp.float32)
    bk = -0.01 * jnp.ones((1, E), jnp.float32)
    bv = 0.02 * jnp.ones((1, E), jnp.float32)
    bo = jnp.zeros((1, E), jnp.float32)
    bf = 0.03 * jnp.ones((1, E), jnp.float32)
    g1 = jnp.ones((1, E), jnp.float32)
    be1 = jnp.zeros((1, E), jnp.float32)
    g2 = jnp.ones((1, E), jnp.float32)
    be2 = jnp.zeros((1, E), jnp.float32)
    return (wq, wk, wv, wo, bq, bk, bv, bo, g1, be1, wf, bf, g2, be2)


if __name__ == "__main__":
    B, S, E = 2, 8, 32          # pose_embed_dim = 32, 8 heads -> head_dim = 4
    key = jax.random.PRNGKey(0)
    kx, kp = jax.random.split(key)
    x = jax.random.normal(kx, (B, S, E), jnp.float32)
    params = make_params(kp, E)

    ref = reference_forward(x, params)

    # f32 MXU-operand path: strict check vs reference.
    out = jax.block_until_ready(mhsa_forward(x, params))
    assert out.shape == (B, S, E)
    assert jnp.allclose(out, ref, rtol=1e-4, atol=1e-4), "f32 kernel mismatch vs reference"

    # bf16 MXU-operand path (v6e/v7x throughput; f32 accumulation). bf16 operands carry
    # ~2^-9 relative error, so the tolerance is correspondingly looser.
    out_bf16 = jax.block_until_ready(
        mhsa_forward(x, params, matmul_dtype=jnp.bfloat16))
    assert jnp.allclose(out_bf16, ref, rtol=2e-2, atol=2e-2), "bf16 kernel mismatch vs reference"

    print("KERNEL_OK")
</pallas_src>

<mosaic_0001>
module attributes {stable_mosaic.version = 11 : i64} {
  func.func @kernel(%arg0: i32, %arg1: memref<8x32xf32, #tpu.memory_space<vmem>>, %arg2: memref<32x96xf32, #tpu.memory_space<vmem>>, %arg3: memref<32x32xf32, #tpu.memory_space<vmem>>, %arg4: memref<32x32xf32, #tpu.memory_space<vmem>>, %arg5: memref<32x8xf32, #tpu.memory_space<vmem>>, %arg6: memref<8x32xf32, #tpu.memory_space<vmem>>, %arg7: memref<1x96xf32, #tpu.memory_space<vmem>>, %arg8: memref<6x32xf32, #tpu.memory_space<vmem>>, %arg9: memref<8x32xf32, #tpu.memory_space<vmem>>) attributes {dimension_semantics = [#tpu.dimension_semantics<parallel>], iteration_bounds = array<i64: 2>, scalar_prefetch = 0 : i64, scratch_operands = 0 : i64, tpu.core_type = #tpu.core_type<tc>, window_params = [{transform_indices = @transform_0, window_bounds = array<i64: 8, 32>}, {pipeline_mode = #tpu.pipeline_mode<synchronous>, transform_indices = @transform_1, window_bounds = array<i64: 32, 96>}, {pipeline_mode = #tpu.pipeline_mode<synchronous>, transform_indices = @transform_2, window_bounds = array<i64: 32, 32>}, {pipeline_mode = #tpu.pipeline_mode<synchronous>, transform_indices = @transform_3, window_bounds = array<i64: 32, 32>}, {pipeline_mode = #tpu.pipeline_mode<synchronous>, transform_indices = @transform_4, window_bounds = array<i64: 32, 8>}, {pipeline_mode = #tpu.pipeline_mode<synchronous>, transform_indices = @transform_5, window_bounds = array<i64: 8, 32>}, {pipeline_mode = #tpu.pipeline_mode<synchronous>, transform_indices = @transform_6, window_bounds = array<i64: 1, 96>}, {pipeline_mode = #tpu.pipeline_mode<synchronous>, transform_indices = @transform_7, window_bounds = array<i64: 6, 32>}, {transform_indices = @transform_8, window_bounds = array<i64: 8, 32>}]} {
    %c0 = arith.constant 0 : index
    %c0_0 = arith.constant 0 : index
    %0 = vector.load %arg1[%c0, %c0_0] : memref<8x32xf32, #tpu.memory_space<vmem>>, vector<8x32xf32>
    %c0_1 = arith.constant 0 : index
    %c0_2 = arith.constant 0 : index
    %1 = vector.load %arg2[%c0_1, %c0_2] : memref<32x96xf32, #tpu.memory_space<vmem>>, vector<32x96xf32>
    %cst = arith.constant dense<0.000000e+00> : vector<8x96xf32>
    %2 = tpu.matmul %0, %1, %cst {dimension_numbers = #tpu.dot_dimension_numbers<[1], [0], [0], [1], [0, 0, 1, 1], [], []>} : vector<8x32xf32>, vector<32x96xf32>, vector<8x96xf32> -> vector<8x96xf32>
    %c0_3 = arith.constant 0 : index
    %c0_4 = arith.constant 0 : index
    %3 = vector.load %arg7[%c0_3, %c0_4] : memref<1x96xf32, #tpu.memory_space<vmem>>, vector<1x96xf32>
    %4 = vector.broadcast %3 : vector<1x96xf32> to vector<8x96xf32>
    %5 = arith.addf %2, %4 : vector<8x96xf32>
    %6 = vector.extract_strided_slice %5 {offsets = [0, 0], sizes = [8, 32], strides = [1, 1]} : vector<8x96xf32> to vector<8x32xf32>
    %cst_5 = arith.constant 5.000000e-01 : f32
    %7 = vector.broadcast %cst_5 : f32 to vector<8x32xf32>
    %8 = arith.mulf %6, %7 : vector<8x32xf32>
    %9 = vector.extract_strided_slice %5 {offsets = [0, 32], sizes = [8, 32], strides = [1, 1]} : vector<8x96xf32> to vector<8x32xf32>
    %10 = vector.extract_strided_slice %5 {offsets = [0, 64], sizes = [8, 32], strides = [1, 1]} : vector<8x96xf32> to vector<8x32xf32>
    %11 = vector.shape_cast %8 : vector<8x32xf32> to vector<8x1x32xf32>
    %12 = vector.shape_cast %9 : vector<8x32xf32> to vector<1x8x32xf32>
    %13 = vector.broadcast %11 : vector<8x1x32xf32> to vector<8x8x32xf32>
    %14 = vector.broadcast %12 : vector<1x8x32xf32> to vector<8x8x32xf32>
    %15 = arith.mulf %13, %14 : vector<8x8x32xf32>
    %16 = vector.shape_cast %15 : vector<8x8x32xf32> to vector<64x32xf32>
    %c0_6 = arith.constant 0 : index
    %c0_7 = arith.constant 0 : index
    %17 = vector.load %arg5[%c0_6, %c0_7] : memref<32x8xf32, #tpu.memory_space<vmem>>, vector<32x8xf32>
    %cst_8 = arith.constant dense<0.000000e+00> : vector<64x8xf32>
    %18 = tpu.matmul %16, %17, %cst_8 {dimension_numbers = #tpu.dot_dimension_numbers<[1], [0], [0], [1], [0, 0, 1, 1], [], []>} : vector<64x32xf32>, vector<32x8xf32>, vector<64x8xf32> -> vector<64x8xf32>
    %19 = vector.shape_cast %18 : vector<64x8xf32> to vector<8x8x8xf32>
    %cst_9 = arith.constant dense<0xFF800000> : vector<8x8xf32>
    %20 = vector.multi_reduction <maximumf>, %19, %cst_9 [1] : vector<8x8x8xf32> to vector<8x8xf32>
    %21 = vector.shape_cast %20 : vector<8x8xf32> to vector<8x1x8xf32>
    %22 = vector.broadcast %21 : vector<8x1x8xf32> to vector<8x8x8xf32>
    %23 = arith.subf %19, %22 : vector<8x8x8xf32>
    %24 = math.exp %23 : vector<8x8x8xf32>
    %cst_10 = arith.constant dense<0.000000e+00> : vector<8x8xf32>
    %25 = vector.multi_reduction <add>, %24, %cst_10 [1] : vector<8x8x8xf32> to vector<8x8xf32>
    %26 = vector.shape_cast %25 : vector<8x8xf32> to vector<8x1x8xf32>
    %27 = vector.broadcast %26 : vector<8x1x8xf32> to vector<8x8x8xf32>
    %28 = arith.divf %24, %27 : vector<8x8x8xf32>
    %29 = vector.shape_cast %28 : vector<8x8x8xf32> to vector<64x8xf32>
    %c0_11 = arith.constant 0 : index
    %c0_12 = arith.constant 0 : index
    %30 = vector.load %arg6[%c0_11, %c0_12] : memref<8x32xf32, #tpu.memory_space<vmem>>, vector<8x32xf32>
    %cst_13 = arith.constant dense<0.000000e+00> : vector<64x32xf32>
    %31 = tpu.matmul %29, %30, %cst_13 {dimension_numbers = #tpu.dot_dimension_numbers<[1], [0], [0], [1], [0, 0, 1, 1], [], []>} : vector<64x8xf32>, vector<8x32xf32>, vector<64x32xf32> -> vector<64x32xf32>
    %32 = vector.shape_cast %31 : vector<64x32xf32> to vector<8x8x32xf32>
    %33 = vector.shape_cast %10 : vector<8x32xf32> to vector<1x8x32xf32>
    %34 = vector.broadcast %33 : vector<1x8x32xf32> to vector<8x8x32xf32>
    %35 = arith.mulf %32, %34 : vector<8x8x32xf32>
    %cst_14 = arith.constant dense<0.000000e+00> : vector<8x32xf32>
    %36 = vector.multi_reduction <add>, %35, %cst_14 [1] : vector<8x8x32xf32> to vector<8x32xf32>
    %c0_15 = arith.constant 0 : index
    %c0_16 = arith.constant 0 : index
    %37 = vector.load %arg8[%c0_15, %c0_16] : memref<6x32xf32, #tpu.memory_space<vmem>>, vector<6x32xf32>
    %38 = vector.extract_strided_slice %37 {offsets = [0, 0], sizes = [1, 32], strides = [1, 1]} : vector<6x32xf32> to vector<1x32xf32>
    %39 = vector.extract_strided_slice %37 {offsets = [1, 0], sizes = [1, 32], strides = [1, 1]} : vector<6x32xf32> to vector<1x32xf32>
    %40 = vector.extract_strided_slice %37 {offsets = [2, 0], sizes = [1, 32], strides = [1, 1]} : vector<6x32xf32> to vector<1x32xf32>
    %41 = vector.extract_strided_slice %37 {offsets = [3, 0], sizes = [1, 32], strides = [1, 1]} : vector<6x32xf32> to vector<1x32xf32>
    %42 = vector.extract_strided_slice %37 {offsets = [4, 0], sizes = [1, 32], strides = [1, 1]} : vector<6x32xf32> to vector<1x32xf32>
    %43 = vector.extract_strided_slice %37 {offsets = [5, 0], sizes = [1, 32], strides = [1, 1]} : vector<6x32xf32> to vector<1x32xf32>
    %c0_17 = arith.constant 0 : index
    %c0_18 = arith.constant 0 : index
    %44 = vector.load %arg3[%c0_17, %c0_18] : memref<32x32xf32, #tpu.memory_space<vmem>>, vector<32x32xf32>
    %cst_19 = arith.constant dense<0.000000e+00> : vector<8x32xf32>
    %45 = tpu.matmul %36, %44, %cst_19 {dimension_numbers = #tpu.dot_dimension_numbers<[1], [0], [0], [1], [0, 0, 1, 1], [], []>} : vector<8x32xf32>, vector<32x32xf32>, vector<8x32xf32> -> vector<8x32xf32>
    %46 = vector.broadcast %38 : vector<1x32xf32> to vector<8x32xf32>
    %47 = arith.addf %45, %46 : vector<8x32xf32>
    %48 = arith.addf %47, %0 : vector<8x32xf32>
    %cst_20 = arith.constant dense<0.000000e+00> : vector<8xf32>
    %49 = vector.multi_reduction <add>, %48, %cst_20 [1] : vector<8x32xf32> to vector<8xf32>
    %50 = vector.shape_cast %49 : vector<8xf32> to vector<8x1xf32>
    %cst_21 = arith.constant 3.200000e+01 : f32
    %51 = vector.broadcast %cst_21 : f32 to vector<8x1xf32>
    %52 = arith.divf %50, %51 : vector<8x1xf32>
    %53 = vector.broadcast %52 : vector<8x1xf32> to vector<8x32xf32>
    %54 = arith.subf %48, %53 : vector<8x32xf32>
    %55 = arith.mulf %54, %54 : vector<8x32xf32>
    %cst_22 = arith.constant dense<0.000000e+00> : vector<8xf32>
    %56 = vector.multi_reduction <add>, %55, %cst_22 [1] : vector<8x32xf32> to vector<8xf32>
    %57 = vector.shape_cast %56 : vector<8xf32> to vector<8x1xf32>
    %cst_23 = arith.constant 3.200000e+01 : f32
    %58 = vector.broadcast %cst_23 : f32 to vector<8x1xf32>
    %59 = arith.divf %57, %58 : vector<8x1xf32>
    %60 = vector.broadcast %52 : vector<8x1xf32> to vector<8x32xf32>
    %61 = arith.subf %48, %60 : vector<8x32xf32>
    %cst_24 = arith.constant 9.99999974E-6 : f32
    %62 = vector.broadcast %cst_24 : f32 to vector<8x1xf32>
    %63 = arith.addf %59, %62 : vector<8x1xf32>
    %64 = math.rsqrt %63 : vector<8x1xf32>
    %65 = vector.broadcast %64 : vector<8x1xf32> to vector<8x32xf32>
    %66 = arith.mulf %61, %65 : vector<8x32xf32>
    %67 = vector.broadcast %39 : vector<1x32xf32> to vector<8x32xf32>
    %68 = arith.mulf %66, %67 : vector<8x32xf32>
    %69 = vector.broadcast %40 : vector<1x32xf32> to vector<8x32xf32>
    %70 = arith.addf %68, %69 : vector<8x32xf32>
    %c0_25 = arith.constant 0 : index
    %c0_26 = arith.constant 0 : index
    %71 = vector.load %arg4[%c0_25, %c0_26] : memref<32x32xf32, #tpu.memory_space<vmem>>, vector<32x32xf32>
    %cst_27 = arith.constant dense<0.000000e+00> : vector<8x32xf32>
    %72 = tpu.matmul %70, %71, %cst_27 {dimension_numbers = #tpu.dot_dimension_numbers<[1], [0], [0], [1], [0, 0, 1, 1], [], []>} : vector<8x32xf32>, vector<32x32xf32>, vector<8x32xf32> -> vector<8x32xf32>
    %73 = vector.broadcast %41 : vector<1x32xf32> to vector<8x32xf32>
    %74 = arith.addf %72, %73 : vector<8x32xf32>
    %cst_28 = arith.constant 5.000000e-01 : f32
    %75 = vector.broadcast %cst_28 : f32 to vector<8x32xf32>
    %76 = arith.mulf %75, %74 : vector<8x32xf32>
    %cst_29 = arith.constant 1.41421354 : f32
    %77 = vector.broadcast %cst_29 : f32 to vector<8x32xf32>
    %78 = arith.divf %74, %77 : vector<8x32xf32>
    %79 = math.erf %78 : vector<8x32xf32>
    %cst_30 = arith.constant 1.000000e+00 : f32
    %80 = vector.broadcast %cst_30 : f32 to vector<8x32xf32>
    %81 = arith.addf %80, %79 : vector<8x32xf32>
    %82 = arith.mulf %76, %81 : vector<8x32xf32>
    %83 = arith.addf %82, %70 : vector<8x32xf32>
    %cst_31 = arith.constant dense<0.000000e+00> : vector<8xf32>
    %84 = vector.multi_reduction <add>, %83, %cst_31 [1] : vector<8x32xf32> to vector<8xf32>
    %85 = vector.shape_cast %84 : vector<8xf32> to vector<8x1xf32>
    %cst_32 = arith.constant 3.200000e+01 : f32
    %86 = vector.broadcast %cst_32 : f32 to vector<8x1xf32>
    %87 = arith.divf %85, %86 : vector<8x1xf32>
    %88 = vector.broadcast %87 : vector<8x1xf32> to vector<8x32xf32>
    %89 = arith.subf %83, %88 : vector<8x32xf32>
    %90 = arith.mulf %89, %89 : vector<8x32xf32>
    %cst_33 = arith.constant dense<0.000000e+00> : vector<8xf32>
    %91 = vector.multi_reduction <add>, %90, %cst_33 [1] : vector<8x32xf32> to vector<8xf32>
    %92 = vector.shape_cast %91 : vector<8xf32> to vector<8x1xf32>
    %cst_34 = arith.constant 3.200000e+01 : f32
    %93 = vector.broadcast %cst_34 : f32 to vector<8x1xf32>
    %94 = arith.divf %92, %93 : vector<8x1xf32>
    %95 = vector.broadcast %87 : vector<8x1xf32> to vector<8x32xf32>
    %96 = arith.subf %83, %95 : vector<8x32xf32>
    %cst_35 = arith.constant 9.99999974E-6 : f32
    %97 = vector.broadcast %cst_35 : f32 to vector<8x1xf32>
    %98 = arith.addf %94, %97 : vector<8x1xf32>
    %99 = math.rsqrt %98 : vector<8x1xf32>
    %100 = vector.broadcast %99 : vector<8x1xf32> to vector<8x32xf32>
    %101 = arith.mulf %96, %100 : vector<8x32xf32>
    %102 = vector.broadcast %42 : vector<1x32xf32> to vector<8x32xf32>
    %103 = arith.mulf %101, %102 : vector<8x32xf32>
    %104 = vector.broadcast %43 : vector<1x32xf32> to vector<8x32xf32>
    %105 = arith.addf %103, %104 : vector<8x32xf32>
    %c0_36 = arith.constant 0 : index
    %c0_37 = arith.constant 0 : index
    %106 = vector.load %arg9[%c0_36, %c0_37] : memref<8x32xf32, #tpu.memory_space<vmem>>, vector<8x32xf32>
    tpu.vector_store %arg9[%c0_36, %c0_37], %105 {strides = array<i32>} : memref<8x32xf32, #tpu.memory_space<vmem>>, vector<8x32xf32>,
    return
  }
  func.func @transform_0(%arg0: i32) -> (i32, i32) {
    %c0_i32 = arith.constant 0 : i32
    %c0_i32_0 = arith.constant 0 : i32
    return %arg0, %c0_i32 : i32, i32
  }
  func.func @transform_1(%arg0: i32) -> (i32, i32) {
    %c0_i32 = arith.constant 0 : i32
    %c0_i32_0 = arith.constant 0 : i32
    %c0_i32_1 = arith.constant 0 : i32
    return %c0_i32, %c0_i32_0 : i32, i32
  }
  func.func @transform_2(%arg0: i32) -> (i32, i32) {
    %c0_i32 = arith.constant 0 : i32
    %c0_i32_0 = arith.constant 0 : i32
    %c0_i32_1 = arith.constant 0 : i32
    return %c0_i32, %c0_i32_0 : i32, i32
  }
  func.func @transform_3(%arg0: i32) -> (i32, i32) {
    %c0_i32 = arith.constant 0 : i32
    %c0_i32_0 = arith.constant 0 : i32
    %c0_i32_1 = arith.constant 0 : i32
    return %c0_i32, %c0_i32_0 : i32, i32
  }
  func.func @transform_4(%arg0: i32) -> (i32, i32) {
    %c0_i32 = arith.constant 0 : i32
    %c0_i32_0 = arith.constant 0 : i32
    %c0_i32_1 = arith.constant 0 : i32
    return %c0_i32, %c0_i32_0 : i32, i32
  }
  func.func @transform_5(%arg0: i32) -> (i32, i32) {
    %c0_i32 = arith.constant 0 : i32
    %c0_i32_0 = arith.constant 0 : i32
    %c0_i32_1 = arith.constant 0 : i32
    return %c0_i32, %c0_i32_0 : i32, i32
  }
  func.func @transform_6(%arg0: i32) -> (i32, i32) {
    %c0_i32 = arith.constant 0 : i32
    %c0_i32_0 = arith.constant 0 : i32
    %c0_i32_1 = arith.constant 0 : i32
    return %c0_i32, %c0_i32_0 : i32, i32
  }
  func.func @transform_7(%arg0: i32) -> (i32, i32) {
    %c0_i32 = arith.constant 0 : i32
    %c0_i32_0 = arith.constant 0 : i32
    %c0_i32_1 = arith.constant 0 : i32
    return %c0_i32, %c0_i32_0 : i32, i32
  }
  func.func @transform_8(%arg0: i32) -> (i32, i32) {
    %c0_i32 = arith.constant 0 : i32
    %c0_i32_0 = arith.constant 0 : i32
    return %arg0, %c0_i32 : i32, i32
  }
}

</mosaic_0001>

<llo_original>
// kernel: tpu_custom_call.1
$region0: #{tpu_custom_call.1}
  #allocation0 [shape = 'u32[]', space=smem, size = 0x4, offset = 0x4, fixed_abs, tag = 'smem constant byte address 0x4 - core index']
  #allocation1 [shape = 'u32[144,128]{1,0:T(1,128)}', space=vmem, size = 0x12000, scoped, tag = 'internal scratch']
  %s0 = inlined_call_operand.hbm [shape: f32[16,32], index: 0, kind: input, shape index: {}]
  %s1 = inlined_call_operand.vmem [shape: f32[32,96], index: 1, kind: input, shape index: {}]
  %s2 = inlined_call_operand.hbm [shape: f32[32,32], index: 2, kind: input, shape index: {}]
  %s3 = inlined_call_operand.hbm [shape: f32[32,32], index: 3, kind: input, shape index: {}]
  %s4 = inlined_call_operand.vmem [shape: f32[32,8], index: 4, kind: input, shape index: {}]
  %s5 = inlined_call_operand.vmem [shape: f32[8,32], index: 5, kind: input, shape index: {}]
  %s6 = inlined_call_operand.vmem [shape: f32[1,96], index: 6, kind: input, shape index: {}]
  %s7 = inlined_call_operand.vmem [shape: f32[6,32], index: 7, kind: input, shape index: {}]
  %s8 = inlined_call_operand.hbm [shape: f32[16,32], index: 8, kind: output, shape index: {}]
  %s9 = sld [smem:[#allocation0]]
  $region77: #{tpu_custom_call.1} parent=0
    _
  %s11 = ssub.s32 1, %s9
  %s12 = scalar_select 0, %s11, %s9
  $region1: #{tpu_custom_call.1} parent=0
    #allocation2 [shape = 'u8[8192]{0}', space=vmem, size = 0x2000, scoped, tag = 'input window, operand 0']
    #allocation3 [shape = 's32[2]{0}', space=sflag, size = 0x8, scoped, tag = 'scoped memory for tpu_custom_call.1']
    #allocation4 [shape = 's32[2]{0}', space=sflag, size = 0x8, scoped, tag = 'scoped memory for tpu_custom_call.1']
    #allocation5 [shape = 'u8[16384]{0}', space=vmem, size = 0x4000, scoped, tag = 'input window, operand 2, single buffered']
    #allocation6 [shape = 's32[1]{0}', space=sflag, size = 0x4, scoped, tag = 'scoped memory for tpu_custom_call.1']
    #allocation7 [shape = 'u8[16384]{0}', space=vmem, size = 0x4000, scoped, tag = 'input window, operand 3, single buffered']
    #allocation8 [shape = 'u8[8192]{0}', space=vmem, size = 0x2000, scoped, tag = 'output window, operand 0']
    %13 = vsyncpa [#allocation3], 0
    %s14 = scalar_lea.sflag [#allocation3], 1
    %15 = vsyncpa %s14, 0
    %16 = vsyncpa [#allocation6], 0
    %17 = vsyncpa [#allocation4], 0
    %s18 = scalar_lea.sflag [#allocation4], 1
    %19 = vsyncpa %s18, 0
    loop: start=0, step=1, limit=4
    $region2: #{tpu_custom_call.1} parent=1 // loop_pre_header
      _
    $region3: #{tpu_custom_call.1} parent=1 // loop_header
      %s21 = sphi 0, %s25
      %p22 = scmp.ge.s32.totalorder %s21, 4
      %s31 = sphi 0, %s33
      %s34 = sphi 0, %s31
      %s35 = sphi 0, %s34
      %s51 = sphi 0, %s35
      %s55 = sphi 0, %s55
      %s57 = sphi 0, %s55
      %s58 = sphi 0, %s57
      %s72 = sphi 0, %s58
      %s76 = sphi 0, %s76
      %s78 = sphi 0, %s76
      %s79 = sphi 0, %s78
      %s93 = sphi 0, %s79
      %s97 = sphi 0, %s97
      %s99 = sphi 0, %s97
      %s100 = sphi 0, %s99
      %s114 = sphi 0, %s100
      %s118 = sphi 0, %s118
      %s120 = sphi 0, %s118
      %s121 = sphi 0, %s120
      %s135 = sphi 0, %s121
      %s139 = sphi 0, %s139
      %s141 = sphi 0, %s139
      %s142 = sphi 0, %s141
      %s156 = sphi 0, %s142
      %s160 = sphi 0, %s160
      %s162 = sphi 0, %s160
      %s163 = sphi 0, %s162
      %s177 = sphi 0, %s163
      %s181 = sphi 0, %s181
      %s183 = sphi 0, %s181
      %s184 = sphi 0, %s183
      %s198 = sphi 0, %s184
      %s204 = sphi 0, %s206
      %s207 = sphi 0, %s204
      %s208 = sphi 0, %s207
      %s224 = sphi 0, %s208
    $region4: #{tpu_custom_call.1} parent=1 // loop_header_branch
      %24 = sbr.rel (%p22) target = $region8
    $region5: #{tpu_custom_call.1} parent=1 // loop_body
      %s26 = ssub.s32 %s21, 1
      %s27 = ssub.s32 %s21, 2
      %s28 = sadd.s32 %s21, 1
      %s29 = ssub.s32 %s21, %s28
      %p30 = scmp.eq.s32.totalorder %s29, 0
      %s32 = sadd.s32 %s31, 1
      %s33 = scalar_select %p30, %s31, %s32
      %p36 = pneg %p30
      %p37 = scmp.eq.s32.totalorder %s21, 1
      %p38 = por %p36, %p37
      %p39 = scmp.ne.s32.totalorder %s31, %s34
      %p40 = scmp.eq.s32.totalorder %s21, 0
      %p41 = por %p39, %p40
      %p42 = scmp.ne.s32.totalorder %s31, %s34
      %p43 = scmp.eq.s32.totalorder %s26, 1
      %p44 = por %p42, %p43
      %p45 = scmp.ne.s32.totalorder %s34, %s35
      %p46 = scmp.eq.s32.totalorder %s26, 0
      %p47 = por %p45, %p46
      %p48 = scmp.ne.s32.totalorder %s34, %s35
      %p49 = scmp.eq.s32.totalorder %s27, 1
      %p50 = por %p48, %p49
      %p52 = scmp.ne.s32.totalorder %s35, %s51
      %p53 = scmp.eq.s32.totalorder %s27, 0
      %p54 = por %p52, %p53
      %s56 = sadd.s32 %s55, 1
      %p59 = scmp.eq.s32.totalorder %s21, 1
      %p60 = scmp.ne.s32.totalorder %s55, %s57
      %p61 = scmp.eq.s32.totalorder %s21, 0
      %p62 = por %p60, %p61
      %p63 = scmp.ne.s32.totalorder %s55, %s57
      %p64 = scmp.eq.s32.totalorder %s26, 1
      %p65 = por %p63, %p64
      %p66 = scmp.ne.s32.totalorder %s57, %s58
      %p67 = scmp.eq.s32.totalorder %s26, 0
      %p68 = por %p66, %p67
      %p69 = scmp.ne.s32.totalorder %s57, %s58
      %p70 = scmp.eq.s32.totalorder %s27, 1
      %p71 = por %p69, %p70
      %p73 = scmp.ne.s32.totalorder %s58, %s72
      %p74 = scmp.eq.s32.totalorder %s27, 0
      %p75 = por %p73, %p74
      %s77 = sadd.s32 %s76, 1
      %p80 = scmp.eq.s32.totalorder %s21, 1
      %p81 = scmp.ne.s32.totalorder %s76, %s78
      %p82 = scmp.eq.s32.totalorder %s21, 0
      %p83 = por %p81, %p82
      %p84 = scmp.ne.s32.totalorder %s76, %s78
      %p85 = scmp.eq.s32.totalorder %s26, 1
      %p86 = por %p84, %p85
      %p87 = scmp.ne.s32.totalorder %s78, %s79
      %p88 = scmp.eq.s32.totalorder %s26, 0
      %p89 = por %p87, %p88
      %p90 = scmp.ne.s32.totalorder %s78, %s79
      %p91 = scmp.eq.s32.totalorder %s27, 1
      %p92 = por %p90, %p91
      %p94 = scmp.ne.s32.totalorder %s79, %s93
      %p95 = scmp.eq.s32.totalorder %s27, 0
      %p96 = por %p94, %p95
      %s98 = sadd.s32 %s97, 1
      %p101 = scmp.eq.s32.totalorder %s21, 1
      %p102 = scmp.ne.s32.totalorder %s97, %s99
      %p103 = scmp.eq.s32.totalorder %s21, 0
      %p104 = por %p102, %p103
      %p105 = scmp.ne.s32.totalorder %s97, %s99
      %p106 = scmp.eq.s32.totalorder %s26, 1
      %p107 = por %p105, %p106
      %p108 = scmp.ne.s32.totalorder %s99, %s100
      %p109 = scmp.eq.s32.totalorder %s26, 0
      %p110 = por %p108, %p109
      %p111 = scmp.ne.s32.totalorder %s99, %s100
      %p112 = scmp.eq.s32.totalorder %s27, 1
      %p113 = por %p111, %p112
      %p115 = scmp.ne.s32.totalorder %s100, %s114
      %p116 = scmp.eq.s32.totalorder %s27, 0
      %p117 = por %p115, %p116
      %s119 = sadd.s32 %s118, 1
      %p122 = scmp.eq.s32.totalorder %s21, 1
      %p123 = scmp.ne.s32.totalorder %s118, %s120
      %p124 = scmp.eq.s32.totalorder %s21, 0
      %p125 = por %p123, %p124
      %p126 = scmp.ne.s32.totalorder %s118, %s120
      %p127 = scmp.eq.s32.totalorder %s26, 1
      %p128 = por %p126, %p127
      %p129 = scmp.ne.s32.totalorder %s120, %s121
      %p130 = scmp.eq.s32.totalorder %s26, 0
      %p131 = por %p129, %p130
      %p132 = scmp.ne.s32.totalorder %s120, %s121
      %p133 = scmp.eq.s32.totalorder %s27, 1
      %p134 = por %p132, %p133
      %p136 = scmp.ne.s32.totalorder %s121, %s135
      %p137 = scmp.eq.s32.totalorder %s27, 0
      %p138 = por %p136, %p137
      %s140 = sadd.s32 %s139, 1
      %p143 = scmp.eq.s32.totalorder %s21, 1
      %p144 = scmp.ne.s32.totalorder %s139, %s141
      %p145 = scmp.eq.s32.totalorder %s21, 0
      %p146 = por %p144, %p145
      %p147 = scmp.ne.s32.totalorder %s139, %s141
      %p148 = scmp.eq.s32.totalorder %s26, 1
      %p149 = por %p147, %p148
      %p150 = scmp.ne.s32.totalorder %s141, %s142
      %p151 = scmp.eq.s32.totalorder %s26, 0
      %p152 = por %p150, %p151
      %p153 = scmp.ne.s32.totalorder %s141, %s142
      %p154 = scmp.eq.s32.totalorder %s27, 1
      %p155 = por %p153, %p154
      %p157 = scmp.ne.s32.totalorder %s142, %s156
      %p158 = scmp.eq.s32.totalorder %s27, 0
      %p159 = por %p157, %p158
      %s161 = sadd.s32 %s160, 1
      %p164 = scmp.eq.s32.totalorder %s21, 1
      %p165 = scmp.ne.s32.totalorder %s160, %s162
      %p166 = scmp.eq.s32.totalorder %s21, 0
      %p167 = por %p165, %p166
      %p168 = scmp.ne.s32.totalorder %s160, %s162
      %p169 = scmp.eq.s32.totalorder %s26, 1
      %p170 = por %p168, %p169
      %p171 = scmp.ne.s32.totalorder %s162, %s163
      %p172 = scmp.eq.s32.totalorder %s26, 0
      %p173 = por %p171, %p172
      %p174 = scmp.ne.s32.totalorder %s162, %s163
      %p175 = scmp.eq.s32.totalorder %s27, 1
      %p176 = por %p174, %p175
      %p178 = scmp.ne.s32.totalorder %s163, %s177
      %p179 = scmp.eq.s32.totalorder %s27, 0
      %p180 = por %p178, %p179
      %s182 = sadd.s32 %s181, 1
      %p185 = scmp.eq.s32.totalorder %s21, 1
      %p186 = scmp.ne.s32.totalorder %s181, %s183
      %p187 = scmp.eq.s32.totalorder %s21, 0
      %p188 = por %p186, %p187
      %p189 = scmp.ne.s32.totalorder %s181, %s183
      %p190 = scmp.eq.s32.totalorder %s26, 1
      %p191 = por %p189, %p190
      %p192 = scmp.ne.s32.totalorder %s183, %s184
      %p193 = scmp.eq.s32.totalorder %s26, 0
      %p194 = por %p192, %p193
      %p195 = scmp.ne.s32.totalorder %s183, %s184
      %p196 = scmp.eq.s32.totalorder %s27, 1
      %p197 = por %p195, %p196
      %p199 = scmp.ne.s32.totalorder %s184, %s198
      %p200 = scmp.eq.s32.totalorder %s27, 0
      %p201 = por %p199, %p200
      %s202 = ssub.s32 %s21, %s28
      %p203 = scmp.eq.s32.totalorder %s202, 0
      %s205 = sadd.s32 %s204, 1
      %s206 = scalar_select %p203, %s204, %s205
      %p209 = pneg %p203
      %p210 = scmp.eq.s32.totalorder %s21, 1
      %p211 = por %p209, %p210
      %p212 = scmp.ne.s32.totalorder %s204, %s207
      %p213 = scmp.eq.s32.totalorder %s21, 0
      %p214 = por %p212, %p213
      %p215 = scmp.ne.s32.totalorder %s204, %s207
      %p216 = scmp.eq.s32.totalorder %s26, 1
      %p217 = por %p215, %p216
      %p218 = scmp.ne.s32.totalorder %s207, %s208
      %p219 = scmp.eq.s32.totalorder %s26, 0
      %p220 = por %p218, %p219
      %p221 = scmp.ne.s32.totalorder %s207, %s208
      %p222 = scmp.eq.s32.totalorder %s27, 1
      %p223 = por %p221, %p222
      %p225 = scmp.ne.s32.totalorder %s208, %s224
      %p226 = scmp.eq.s32.totalorder %s27, 0
      %p227 = por %p225, %p226
      %p228 = scmp.le.s32.totalorder 1, %s21
      %p229 = scmp.lt.s32.totalorder %s21, 3
      %p230 = pnand %p228, %p229
      %p231 = pneg %p230
      // Predicated region
      $region9: #{tpu_custom_call.1} parent=5 // pred_check
        _
      $region10: #{tpu_custom_call.1} parent=5 // pred_check_branch
        %233 = sbr.rel (%p230) target = $region12
      $region11: #{tpu_custom_call.1} parent=5 // pred_region
        %s234 = ssub.s32 %s21, 1
        // Predicated region
        $region13: #{tpu_custom_call.1} parent=11 // pred_check
          %p235 = pneg %p68
        $region14: #{tpu_custom_call.1} parent=11 // pred_check_branch
          %237 = sbr.rel (%p235) target = $region16
        $region15: #{tpu_custom_call.1} parent=11 // pred_region
          _
        $region16: #{tpu_custom_call.1} parent=11 // pred_fallthru
          _
        // Predicated region
        $region17: #{tpu_custom_call.1} parent=11 // pred_check
          %p238 = pneg %p89
        $region18: #{tpu_custom_call.1} parent=11 // pred_check_branch
          %240 = sbr.rel (%p238) target = $region20
        $region19: #{tpu_custom_call.1} parent=11 // pred_region
          %s242 = ssub.s32 512, 512
          %243 = vsyncadd [#allocation6], %s242
          %s244 = sshll.u32 [#allocation5], 4
          %s245 = int_to_ptr.vmem [resolvable:$true] %s244
          %250 = dma.hbm_to_vmem [thread:$0]  %s2, 512, %s245, [#allocation6], 128, 128, 8
        $region20: #{tpu_custom_call.1} parent=11 // pred_fallthru
          _
        // Predicated region
        $region21: #{tpu_custom_call.1} parent=11 // pred_check
          %p251 = pneg %p110
        $region22: #{tpu_custom_call.1} parent=11 // pred_check_branch
          %253 = sbr.rel (%p251) target = $region24
        $region23: #{tpu_custom_call.1} parent=11 // pred_region
          %s255 = ssub.s32 512, 512
          %256 = vsyncadd [#allocation6], %s255
          %s257 = sshll.u32 [#allocation7], 4
          %s258 = int_to_ptr.vmem [resolvable:$true] %s257
          %263 = dma.hbm_to_vmem [thread:$0]  %s3, 512, %s258, [#allocation6], 128, 128, 8
        $region24: #{tpu_custom_call.1} parent=11 // pred_fallthru
          _
        // Predicated region
        $region25: #{tpu_custom_call.1} parent=11 // pred_check
          %p264 = pneg %p131
        $region26: #{tpu_custom_call.1} parent=11 // pred_check_branch
          %266 = sbr.rel (%p264) target = $region28
        $region27: #{tpu_custom_call.1} parent=11 // pred_region
          _
        $region28: #{tpu_custom_call.1} parent=11 // pred_fallthru
          _
        // Predicated region
        $region29: #{tpu_custom_call.1} parent=11 // pred_check
          %p267 = pneg %p152
        $region30: #{tpu_custom_call.1} parent=11 // pred_check_branch
          %269 = sbr.rel (%p267) target = $region32
        $region31: #{tpu_custom_call.1} parent=11 // pred_region
          _
        $region32: #{tpu_custom_call.1} parent=11 // pred_fallthru
          _
        // Predicated region
        $region33: #{tpu_custom_call.1} parent=11 // pred_check
          %p270 = pneg %p173
        $region34: #{tpu_custom_call.1} parent=11 // pred_check_branch
          %272 = sbr.rel (%p270) target = $region36
        $region35: #{tpu_custom_call.1} parent=11 // pred_region
          _
        $region36: #{tpu_custom_call.1} parent=11 // pred_fallthru
          _
        // Predicated region
        $region37: #{tpu_custom_call.1} parent=11 // pred_check
          %p273 = pneg %p194
        $region38: #{tpu_custom_call.1} parent=11 // pred_check_branch
          %275 = sbr.rel (%p273) target = $region40
        $region39: #{tpu_custom_call.1} parent=11 // pred_region
          _
        $region40: #{tpu_custom_call.1} parent=11 // pred_fallthru
          _
      $region12: #{tpu_custom_call.1} parent=5 // pred_fallthru
        _
      %p276 = scmp.lt.s32.totalorder %s21, 2
      // Predicated region
      $region41: #{tpu_custom_call.1} parent=5 // pred_check
        %p277 = pneg %p276
      $region42: #{tpu_custom_call.1} parent=5 // pred_check_branch
        %279 = sbr.rel (%p277) target = $region44
      $region43: #{tpu_custom_call.1} parent=5 // pred_region
        // Predicated region
        $region45: #{tpu_custom_call.1} parent=43 // pred_check
          %p280 = pneg %p41
        $region46: #{tpu_custom_call.1} parent=43 // pred_check_branch
          %282 = sbr.rel (%p280) target = $region48
        $region47: #{tpu_custom_call.1} parent=43 // pred_region
          %s283 = sand.u32 %s31, 1
          %s284 = scalar_lea.sflag [#allocation3], %s283
          %s285 = sand.u32 %s31, 1
          %s286 = smul.addr %s285, 8
          %s287 = scalar_lea.vmem [#allocation2], %s286
          %s289 = ssub.s32 128, 128
          %290 = vsyncadd %s284, %s289
          %s291 = smul.addr %s21, 128
          %s292 = scalar_lea.hbm %s0, %s291
          %s294 = sshll.u32 %s287, 4
          %s295 = int_to_ptr.vmem [resolvable:$true] %s294
          %297 = dma.hbm_to_vmem [thread:$0]  %s292, 128, %s295, %s284
        $region48: #{tpu_custom_call.1} parent=43 // pred_fallthru
          _
      $region44: #{tpu_custom_call.1} parent=5 // pred_fallthru
        _
      %p298 = scmp.le.s32.totalorder 1, %s21
      %p299 = scmp.lt.s32.totalorder %s21, 3
      %p300 = pnand %p298, %p299
      %p301 = pneg %p300
      // Predicated region
      $region49: #{tpu_custom_call.1} parent=5 // pred_check
        _
      $region50: #{tpu_custom_call.1} parent=5 // pred_check_branch
        %303 = sbr.rel (%p300) target = $region52
      $region51: #{tpu_custom_call.1} parent=5 // pred_region
        %s304 = ssub.s32 %s21, 1
        %s305 = sand.u32 %s34, 1
        %s306 = scalar_lea.sflag [#allocation3], %s305
        %s307 = sand.u32 %s34, 1
        %s308 = smul.addr %s307, 8
        %s309 = scalar_lea.vmem [#allocation2], %s308
        // Predicated region
        $region53: #{tpu_custom_call.1} parent=51 // pred_check
          %p310 = pneg %p47
        $region54: #{tpu_custom_call.1} parent=51 // pred_check_branch
          %312 = sbr.rel (%p310) target = $region56
        $region55: #{tpu_custom_call.1} parent=51 // pred_region
          %313 = dma.done %s306, 128
        $region56: #{tpu_custom_call.1} parent=51 // pred_fallthru
          _
        // Predicated region
        $region57: #{tpu_custom_call.1} parent=51 // pred_check
          %p314 = pneg %p89
        $region58: #{tpu_custom_call.1} parent=51 // pred_check_branch
          %316 = sbr.rel (%p314) target = $region60
        $region59: #{tpu_custom_call.1} parent=51 // pred_region
          %317 = dma.done [#allocation6], 512
        $region60: #{tpu_custom_call.1} parent=51 // pred_fallthru
          _
        // Predicated region
        $region61: #{tpu_custom_call.1} parent=51 // pred_check
          %p318 = pneg %p110
        $region62: #{tpu_custom_call.1} parent=51 // pred_check_branch
          %320 = sbr.rel (%p318) target = $region64
        $region63: #{tpu_custom_call.1} parent=51 // pred_region
          %321 = dma.done [#allocation6], 512
        $region64: #{tpu_custom_call.1} parent=51 // pred_fallthru
          _
        %s322 = sand.u32 %s34, 1
        %s323 = scalar_lea.sflag [#allocation3], %s322
        %s324 = sand.u32 %s34, 1
        %s325 = smul.addr %s324, 8
        %s326 = scalar_lea.vmem [#allocation2], %s325
        %p327 = pneg %p47
        %p328 = pneg %p44
        %p329 = pneg %p68
        %p330 = pneg %p65
        %p331 = pneg %p89
        %p332 = pneg %p86
        %p333 = pneg %p110
        %p334 = pneg %p107
        %p335 = pneg %p131
        %p336 = pneg %p128
        %p337 = pneg %p152
        %p338 = pneg %p149
        %p339 = pneg %p173
        %p340 = pneg %p170
        %p341 = pneg %p194
        %p342 = pneg %p191
        %p343 = pneg %p220
        %p344 = pneg %p217
        %s345 = sand.u32 %s207, 1
        %s346 = scalar_lea.sflag [#allocation4], %s345
        %s347 = sand.u32 %s207, 1
        %s348 = smul.addr %s347, 8
        %s349 = scalar_lea.vmem [#allocation8], %s348
        %v350 = vld [vmem:[%s309] sm:$0xff]
        %v351 = vld [vmem:[%s1] sm:$0xff]
        %v352 = vld [vmem:[%s1 + $0x8] sm:$0xff]
        %v353 = vld [vmem:[%s1 + $0x10] sm:$0xff]
        %v354 = vld [vmem:[%s1 + $0x18] sm:$0xff]
        %v355 = vld [vmem:[%s6] sm:$0x1]
        %v357 = vlaneseq
        %v358 = vshrl.u32 %v357, 7
        %v359 = vsub.s32 0, %v358
        %v360 = vrot.slane %v355, %v359
        %vm362 = vcmask 261120
        %v364 = vsel %vm362, %v350, 0
        %366 = vmatprep.subr.mxu0 0.0
        %367 = vmatpush1.msra.mxu0 %v351
        %368 = vmatprep.subr.mxu0 0.0
        %369 = vmatpush1.msra.mxu0 %v352
        %370 = vmatprep.subr.mxu0 0.0
        %371 = vmatpush1.msra.mxu0 %v353
        %372 = vmatprep.subr.mxu0 0.0
        %373 = vmatpush1.msra.mxu0 %v354
        %374 = vmatprep.subr.mxu0 0.0
        %375 = vmatpush1.msra.mxu0 0.0
        %376 = vmatprep.subr.mxu0 0.0
        %377 = vmatpush1.msra.mxu0 0.0
        %378 = vmatprep.subr.mxu0 0.0
        %379 = vmatpush1.msra.mxu0 0.0
        %380 = vmatprep.subr.mxu0 0.0
        %381 = vmatpush1.msra.mxu0 0.0
        %382 = vmatprep.subr.mxu0 0.0
        %383 = vmatpush1.msra.mxu0 0.0
        %384 = vmatprep.subr.mxu0 0.0
        %385 = vmatpush1.msra.mxu0 0.0
        %386 = vmatprep.subr.mxu0 0.0
        %387 = vmatpush1.msra.mxu0 0.0
        %388 = vmatprep.subr.mxu0 0.0
        %389 = vmatpush1.msra.mxu0 0.0
        %390 = vmatprep.subr.mxu0 0.0
        %391 = vmatpush1.msra.mxu0 0.0
        %392 = vmatprep.subr.mxu0 0.0
        %393 = vmatpush1.msra.mxu0 0.0
        %394 = vmatprep.subr.mxu0 0.0
        %395 = vmatpush1.msra.mxu0 0.0
        %396 = vmatprep.subr.mxu0 0.0
        %397 = vmatpush1.msra.mxu0 0.0
        %398 = vmatprep.subr.mxu0 0.0
        %399 = vmatpush1.msra.mxu0 0.0
        %400 = vmatprep.subr.mxu0 0.0
        %401 = vmatpush1.msra.mxu0 0.0
        %402 = vmatprep.subr.mxu0 0.0
        %403 = vmatpush1.msra.mxu0 0.0
        %404 = vmatprep.subr.mxu0 0.0
        %405 = vmatpush1.msra.mxu0 0.0
        %406 = vmatprep.subr.mxu0 0.0
        %407 = vmatpush1.msra.mxu0 0.0
        %408 = vmatprep.subr.mxu0 0.0
        %409 = vmatpush1.msra.mxu0 0.0
        %410 = vmatprep.subr.mxu0 0.0
        %411 = vmatpush1.msra.mxu0 0.0
        %412 = vmatprep.subr.mxu0 0.0
        %413 = vmatpush1.msra.mxu0 0.0
        %414 = vmatprep.subr.mxu0 0.0
        %415 = vmatpush1.msra.mxu0 0.0
        %416 = vmatprep.subr.mxu0 0.0
        %417 = vmatpush1.msra.mxu0 0.0
        %418 = vmatprep.subr.mxu0 0.0
        %419 = vmatpush1.msra.mxu0 0.0
        %420 = vmatprep.subr.mxu0 0.0
        %421 = vmatpush1.msra.mxu0 0.0
        %422 = vmatprep.subr.mxu0 0.0
        %423 = vmatpush1.msra.mxu0 0.0
        %424 = vmatprep.subr.mxu0 0.0
        %425 = vmatpush1.msra.mxu0 0.0
        %426 = vmatprep.subr.mxu0 0.0
        %427 = vmatpush1.msra.mxu0 0.0
        %428 = vmatprep.subr.mxu0 0.0
        %429 = vmatpush1.msra.mxu0 0.0
        %430 = vmatprep.mubr.f32.mxu0 0.0
        %431 = vmatmul.mubr.f32.gmra.mrb[0].mxu0 %v364
        %v432 = vpop.f32.mrb[0].mxu0
        %v433 = vadd.f32 %v360, %v432
        %v434 = vpop.f32.mrb[0].mxu0
        %435 = vdwg.mxu0
        %v436 = vmul.f32 %v433, 0.5
        %v438 = vcombine.high %v436, %v436
        %v440 = vunpack.c.l.s4 1966171168
        %v441 = vunpack.c.0.s8 %v440
        %v442 = vlaneseq
        %v443 = vshrl.u32 %v442, 7
        %v444 = vsub.s32 %v441, %v443
        %v445 = vrot.slane %v436, %v444
        %v447 = vunpack.c.l.s4 1966171168
        %v448 = vunpack.c.0.s8 %v447
        %v449 = vlaneseq
        %v450 = vshrl.u32 %v449, 7
        %v451 = vsub.s32 %v448, %v450
        %v452 = vrot.slane %v438, %v451
        %v453 = vcombine.high %v445, %v445
        %v454 = vcombine.high %v452, %v452
        %v456 = vunpack.c.l.s4 1966171168
        %v457 = vunpack.c.0.s8 %v456
        %v458 = vlaneseq
        %v459 = vshrl.u32 %v458, 7
        %v460 = vsub.s32 %v457, %v459
        %v461 = vrot.slane %v445, %v460
        %v463 = vunpack.c.l.s4 1966171168
        %v464 = vunpack.c.0.s8 %v463
        %v465 = vlaneseq
        %v466 = vshrl.u32 %v465, 7
        %v467 = vsub.s32 %v464, %v466
        %v468 = vrot.slane %v452, %v467
        %v470 = vunpack.c.l.s4 1966171168
        %v471 = vunpack.c.0.s8 %v470
        %v472 = vlaneseq
        %v473 = vshrl.u32 %v472, 7
        %v474 = vsub.s32 %v471, %v473
        %v475 = vrot.slane %v453, %v474
        %v477 = vunpack.c.l.s4 1966171168
        %v478 = vunpack.c.0.s8 %v477
        %v479 = vlaneseq
        %v480 = vshrl.u32 %v479, 7
        %v481 = vsub.s32 %v478, %v480
        %v482 = vrot.slane %v454, %v481
        %v483 = vcombine.high %v461, %v461
        %v484 = vcombine.high %v468, %v468
        %v485 = vcombine.high %v475, %v475
        %v486 = vcombine.high %v482, %v482
        %v487 = vlaneseq
        %v488 = vshrl.u32 %v487, 7
        %v489 = vsub.s32 0, %v488
        %v490 = vrot.slane %v461, %v489
        %v491 = vlaneseq
        %v492 = vshrl.u32 %v491, 7
        %v493 = vsub.s32 0, %v492
        %v494 = vrot.slane %v475, %v493
        %v495 = vlaneseq
        %v496 = vshrl.u32 %v495, 7
        %v497 = vsub.s32 0, %v496
        %v498 = vrot.slane %v483, %v497
        %v499 = vlaneseq
        %v500 = vshrl.u32 %v499, 7
        %v501 = vsub.s32 0, %v500
        %v502 = vrot.slane %v485, %v501
        %v503 = vlaneseq
        %v504 = vshrl.u32 %v503, 7
        %v505 = vsub.s32 0, %v504
        %v506 = vrot.slane %v468, %v505
        %v507 = vlaneseq
        %v508 = vshrl.u32 %v507, 7
        %v509 = vsub.s32 0, %v508
        %v510 = vrot.slane %v482, %v509
        %v511 = vlaneseq
        %v512 = vshrl.u32 %v511, 7
        %v513 = vsub.s32 0, %v512
        %v514 = vrot.slane %v484, %v513
        %v515 = vlaneseq
        %v516 = vshrl.u32 %v515, 7
        %v517 = vsub.s32 0, %v516
        %v518 = vrot.slane %v486, %v517
        %528 = vrot.lane.b32.xlu0 %v433, 96
        %v529 = vpop.permute.xlu0 %528
        %v531 = vmul.f32 %v490, %v529
        %v532 = vmul.f32 %v494, %v529
        %v533 = vmul.f32 %v498, %v529
        %v534 = vmul.f32 %v502, %v529
        %v535 = vmul.f32 %v506, %v529
        %v536 = vmul.f32 %v510, %v529
        %v537 = vmul.f32 %v514, %v529
        %v538 = vmul.f32 %v518, %v529
        %v539 = vld [vmem:[%s4] sm:$0xff]
        %v540 = vld [vmem:[%s4 + $0x8] sm:$0xff]
        %v541 = vld [vmem:[%s4 + $0x10] sm:$0xff]
        %v542 = vld [vmem:[%s4 + $0x18] sm:$0xff]
        %v544 = vsel %vm362, %v531, 0
        %v547 = vsel %vm362, %v532, 0
        %v550 = vsel %vm362, %v533, 0
        %v553 = vsel %vm362, %v534, 0
        %v556 = vsel %vm362, %v535, 0
        %v559 = vsel %vm362, %v536, 0
        %v562 = vsel %vm362, %v537, 0
        %v565 = vsel %vm362, %v538, 0
        %567 = vmatprep.subr.mxu0 0.0
        %568 = vmatpush1.msra.mxu0 %v539
        %569 = vmatprep.subr.mxu0 0.0
        %570 = vmatpush1.msra.mxu0 %v540
        %571 = vmatprep.subr.mxu0 0.0
        %572 = vmatpush1.msra.mxu0 %v541
        %573 = vmatprep.subr.mxu0 0.0
        %574 = vmatpush1.msra.mxu0 %v542
        %575 = vmatprep.subr.mxu0 0.0
        %576 = vmatpush1.msra.mxu0 0.0
        %577 = vmatprep.subr.mxu0 0.0
        %578 = vmatpush1.msra.mxu0 0.0
        %579 = vmatprep.subr.mxu0 0.0
        %580 = vmatpush1.msra.mxu0 0.0
        %581 = vmatprep.subr.mxu0 0.0
        %582 = vmatpush1.msra.mxu0 0.0
        %583 = vmatprep.subr.mxu0 0.0
        %584 = vmatpush1.msra.mxu0 0.0
        %585 = vmatprep.subr.mxu0 0.0
        %586 = vmatpush1.msra.mxu0 0.0
        %587 = vmatprep.subr.mxu0 0.0
        %588 = vmatpush1.msra.mxu0 0.0
        %589 = vmatprep.subr.mxu0 0.0
        %590 = vmatpush1.msra.mxu0 0.0
        %591 = vmatprep.subr.mxu0 0.0
        %592 = vmatpush1.msra.mxu0 0.0
        %593 = vmatprep.subr.mxu0 0.0
        %594 = vmatpush1.msra.mxu0 0.0
        %595 = vmatprep.subr.mxu0 0.0
        %596 = vmatpush1.msra.mxu0 0.0
        %597 = vmatprep.subr.mxu0 0.0
        %598 = vmatpush1.msra.mxu0 0.0
        %599 = vmatprep.subr.mxu0 0.0
        %600 = vmatpush1.msra.mxu0 0.0
        %601 = vmatprep.subr.mxu0 0.0
        %602 = vmatpush1.msra.mxu0 0.0
        %603 = vmatprep.subr.mxu0 0.0
        %604 = vmatpush1.msra.mxu0 0.0
        %605 = vmatprep.subr.mxu0 0.0
        %606 = vmatpush1.msra.mxu0 0.0
        %607 = vmatprep.subr.mxu0 0.0
        %608 = vmatpush1.msra.mxu0 0.0
        %609 = vmatprep.subr.mxu0 0.0
        %610 = vmatpush1.msra.mxu0 0.0
        %611 = vmatprep.subr.mxu0 0.0
        %612 = vmatpush1.msra.mxu0 0.0
        %613 = vmatprep.subr.mxu0 0.0
        %614 = vmatpush1.msra.mxu0 0.0
        %615 = vmatprep.subr.mxu0 0.0
        %616 = vmatpush1.msra.mxu0 0.0
        %617 = vmatprep.subr.mxu0 0.0
        %618 = vmatpush1.msra.mxu0 0.0
        %619 = vmatprep.subr.mxu0 0.0
        %620 = vmatpush1.msra.mxu0 0.0
        %621 = vmatprep.subr.mxu0 0.0
        %622 = vmatpush1.msra.mxu0 0.0
        %623 = vmatprep.subr.mxu0 0.0
        %624 = vmatpush1.msra.mxu0 0.0
        %625 = vmatprep.subr.mxu0 0.0
        %626 = vmatpush1.msra.mxu0 0.0
        %627 = vmatprep.subr.mxu0 0.0
        %628 = vmatpush1.msra.mxu0 0.0
        %629 = vmatprep.subr.mxu0 0.0
        %630 = vmatpush1.msra.mxu0 0.0
        %631 = vmatprep.mubr.f32.mxu0 0.0
        %632 = vmatmul.mubr.f32.gmra.mrb[0].mxu0 %v544
        %v633 = vpop.f32.mrb[0].mxu0
        %v634 = vadd.f32 0.0, %v633
        %v635 = vpop.f32.mrb[0].mxu0
        %636 = vmatprep.mubr.f32.mxu0 0.0
        %637 = vmatmul.mubr.f32.gmra.mrb[0].mxu0 %v547
        %v638 = vpop.f32.mrb[0].mxu0
        %v639 = vadd.f32 0.0, %v638
        %v640 = vpop.f32.mrb[0].mxu0
        %641 = vmatprep.mubr.f32.mxu0 0.0
        %642 = vmatmul.mubr.f32.gmra.mrb[0].mxu0 %v550
        %v643 = vpop.f32.mrb[0].mxu0
        %v644 = vadd.f32 0.0, %v643
        %v645 = vpop.f32.mrb[0].mxu0
        %646 = vmatprep.mubr.f32.mxu0 0.0
        %647 = vmatmul.mubr.f32.gmra.mrb[0].mxu0 %v553
        %v648 = vpop.f32.mrb[0].mxu0
        %v649 = vadd.f32 0.0, %v648
        %v650 = vpop.f32.mrb[0].mxu0
        %651 = vmatprep.mubr.f32.mxu0 0.0
        %652 = vmatmul.mubr.f32.gmra.mrb[0].mxu0 %v556
        %v653 = vpop.f32.mrb[0].mxu0
        %v654 = vadd.f32 0.0, %v653
        %v655 = vpop.f32.mrb[0].mxu0
        %656 = vmatprep.mubr.f32.mxu0 0.0
        %657 = vmatmul.mubr.f32.gmra.mrb[0].mxu0 %v559
        %v658 = vpop.f32.mrb[0].mxu0
        %v659 = vadd.f32 0.0, %v658
        %v660 = vpop.f32.mrb[0].mxu0
        %661 = vmatprep.mubr.f32.mxu0 0.0
        %662 = vmatmul.mubr.f32.gmra.mrb[0].mxu0 %v562
        %v663 = vpop.f32.mrb[0].mxu0
        %v664 = vadd.f32 0.0, %v663
        %v665 = vpop.f32.mrb[0].mxu0
        %666 = vmatprep.mubr.f32.mxu0 0.0
        %667 = vmatmul.mubr.f32.gmra.mrb[0].mxu0 %v565
        %v668 = vpop.f32.mrb[0].mxu0
        %v669 = vadd.f32 0.0, %v668
        %v670 = vpop.f32.mrb[0].mxu0
        %671 = vdwg.mxu0
        %vm672 = vcmask 64512
        %v673 = vsel %vm672, %v634, -inf
        %v674 = vrot.slane %v673, 4
        %v675 = vmax.f32 %v673, %v674
        %v676 = vrot.slane %v675, 2
        %v677 = vmax.f32 %v675, %v676
        %v678 = vrot.slane %v677, 1
        %v679 = vmax.f32 %v677, %v678
        %v680 = vsel %vm672, %v639, -inf
        %v681 = vrot.slane %v680, 4
        %v682 = vmax.f32 %v680, %v681
        %v683 = vrot.slane %v682, 2
        %v684 = vmax.f32 %v682, %v683
        %v685 = vrot.slane %v684, 1
        %v686 = vmax.f32 %v684, %v685
        %v687 = vsel %vm672, %v644, -inf
        %v688 = vrot.slane %v687, 4
        %v689 = vmax.f32 %v687, %v688
        %v690 = vrot.slane %v689, 2
        %v691 = vmax.f32 %v689, %v690
        %v692 = vrot.slane %v691, 1
        %v693 = vmax.f32 %v691, %v692
        %v694 = vsel %vm672, %v649, -inf
        %v695 = vrot.slane %v694, 4
        %v696 = vmax.f32 %v694, %v695
        %v697 = vrot.slane %v696, 2
        %v698 = vmax.f32 %v696, %v697
        %v699 = vrot.slane %v698, 1
        %v700 = vmax.f32 %v698, %v699
        %v701 = vsel %vm672, %v654, -inf
        %v702 = vrot.slane %v701, 4
        %v703 = vmax.f32 %v701, %v702
        %v704 = vrot.slane %v703, 2
        %v705 = vmax.f32 %v703, %v704
        %v706 = vrot.slane %v705, 1
        %v707 = vmax.f32 %v705, %v706
        %v708 = vsel %vm672, %v659, -inf
        %v709 = vrot.slane %v708, 4
        %v710 = vmax.f32 %v708, %v709
        %v711 = vrot.slane %v710, 2
        %v712 = vmax.f32 %v710, %v711
        %v713 = vrot.slane %v712, 1
        %v714 = vmax.f32 %v712, %v713
        %v715 = vsel %vm672, %v664, -inf
        %v716 = vrot.slane %v715, 4
        %v717 = vmax.f32 %v715, %v716
        %v718 = vrot.slane %v717, 2
        %v719 = vmax.f32 %v717, %v718
        %v720 = vrot.slane %v719, 1
        %v721 = vmax.f32 %v719, %v720
        %v722 = vsel %vm672, %v669, -inf
        %v723 = vrot.slane %v722, 4
        %v724 = vmax.f32 %v722, %v723
        %v725 = vrot.slane %v724, 2
        %v726 = vmax.f32 %v724, %v725
        %v727 = vrot.slane %v726, 1
        %v728 = vmax.f32 %v726, %v727
        %v729 = vsub.f32 %v634, %v679
        %v730 = vsub.f32 %v639, %v686
        %v731 = vsub.f32 %v644, %v693
        %v732 = vsub.f32 %v649, %v700
        %v733 = vsub.f32 %v654, %v707
        %v734 = vsub.f32 %v659, %v714
        %v735 = vsub.f32 %v664, %v721
        %v736 = vsub.f32 %v669, %v728
        %v737 = vmul.f32 %v729, 1.442695
        %v738 = vpow.pop %v737
        %v739 = vmul.f32 %v730, 1.442695
        %v740 = vpow.pop %v739
        %v741 = vmul.f32 %v731, 1.442695
        %v742 = vpow.pop %v741
        %v743 = vmul.f32 %v732, 1.442695
        %v744 = vpow.pop %v743
        %v745 = vmul.f32 %v733, 1.442695
        %v746 = vpow.pop %v745
        %v747 = vmul.f32 %v734, 1.442695
        %v748 = vpow.pop %v747
        %v749 = vmul.f32 %v735, 1.442695
        %v750 = vpow.pop %v749
        %v751 = vmul.f32 %v736, 1.442695
        %v752 = vpow.pop %v751
        %v753 = vsel %vm672, %v738, 0.0
        %v754 = vrot.slane %v753, 4
        %v755 = vadd.f32 %v753, %v754
        %v756 = vrot.slane %v755, 2
        %v757 = vadd.f32 %v755, %v756
        %v758 = vrot.slane %v757, 1
        %v759 = vadd.f32 %v757, %v758
        %v760 = vsel %vm672, %v740, 0.0
        %v761 = vrot.slane %v760, 4
        %v762 = vadd.f32 %v760, %v761
        %v763 = vrot.slane %v762, 2
        %v764 = vadd.f32 %v762, %v763
        %v765 = vrot.slane %v764, 1
        %v766 = vadd.f32 %v764, %v765
        %v767 = vsel %vm672, %v742, 0.0
        %v768 = vrot.slane %v767, 4
        %v769 = vadd.f32 %v767, %v768
        %v770 = vrot.slane %v769, 2
        %v771 = vadd.f32 %v769, %v770
        %v772 = vrot.slane %v771, 1
        %v773 = vadd.f32 %v771, %v772
        %v774 = vsel %vm672, %v744, 0.0
        %v775 = vrot.slane %v774, 4
        %v776 = vadd.f32 %v774, %v775
        %v777 = vrot.slane %v776, 2
        %v778 = vadd.f32 %v776, %v777
        %v779 = vrot.slane %v778, 1
        %v780 = vadd.f32 %v778, %v779
        %v781 = vsel %vm672, %v746, 0.0
        %v782 = vrot.slane %v781, 4
        %v783 = vadd.f32 %v781, %v782
        %v784 = vrot.slane %v783, 2
        %v785 = vadd.f32 %v783, %v784
        %v786 = vrot.slane %v785, 1
        %v787 = vadd.f32 %v785, %v786
        %v788 = vsel %vm672, %v748, 0.0
        %v789 = vrot.slane %v788, 4
        %v790 = vadd.f32 %v788, %v789
        %v791 = vrot.slane %v790, 2
        %v792 = vadd.f32 %v790, %v791
        %v793 = vrot.slane %v792, 1
        %v794 = vadd.f32 %v792, %v793
        %v795 = vsel %vm672, %v750, 0.0
        %v796 = vrot.slane %v795, 4
        %v797 = vadd.f32 %v795, %v796
        %v798 = vrot.slane %v797, 2
        %v799 = vadd.f32 %v797, %v798
        %v800 = vrot.slane %v799, 1
        %v801 = vadd.f32 %v799, %v800
        %v802 = vsel %vm672, %v752, 0.0
        %v803 = vrot.slane %v802, 4
        %v804 = vadd.f32 %v802, %v803
        %v805 = vrot.slane %v804, 2
        %v806 = vadd.f32 %v804, %v805
        %v807 = vrot.slane %v806, 1
        %v808 = vadd.f32 %v806, %v807
        %v809 = vrcp.pop %v759
        %v810 = vmul.f32 %v738, %v809
        %v811 = vrcp.pop %v766
        %v812 = vmul.f32 %v740, %v811
        %v813 = vrcp.pop %v773
        %v814 = vmul.f32 %v742, %v813
        %v815 = vrcp.pop %v780
        %v816 = vmul.f32 %v744, %v815
        %v817 = vrcp.pop %v787
        %v818 = vmul.f32 %v746, %v817
        %v819 = vrcp.pop %v794
        %v820 = vmul.f32 %v748, %v819
        %v821 = vrcp.pop %v801
        %v822 = vmul.f32 %v750, %v821
        %v823 = vrcp.pop %v808
        %v824 = vmul.f32 %v752, %v823
        %v825 = vld [vmem:[%s5] sm:$0xff]
        %v827 = vsel %vm672, %v810, 0
        %v830 = vsel %vm672, %v812, 0
        %v833 = vsel %vm672, %v814, 0
        %v836 = vsel %vm672, %v816, 0
        %v839 = vsel %vm672, %v818, 0
        %v842 = vsel %vm672, %v820, 0
        %v845 = vsel %vm672, %v822, 0
        %v848 = vsel %vm672, %v824, 0
        %850 = vmatprep.subr.mxu0 0.0
        %851 = vmatpush1.msra.mxu0 %v825
        %852 = vmatprep.subr.mxu0 0.0
        %853 = vmatpush1.msra.mxu0 0.0
        %854 = vmatprep.subr.mxu0 0.0
        %855 = vmatpush1.msra.mxu0 0.0
        %856 = vmatprep.subr.mxu0 0.0
        %857 = vmatpush1.msra.mxu0 0.0
        %858 = vmatprep.subr.mxu0 0.0
        %859 = vmatpush1.msra.mxu0 0.0
        %860 = vmatprep.subr.mxu0 0.0
        %861 = vmatpush1.msra.mxu0 0.0
        %862 = vmatprep.subr.mxu0 0.0
        %863 = vmatpush1.msra.mxu0 0.0
        %864 = vmatprep.subr.mxu0 0.0
        %865 = vmatpush1.msra.mxu0 0.0
        %866 = vmatprep.subr.mxu0 0.0
        %867 = vmatpush1.msra.mxu0 0.0
        %868 = vmatprep.subr.mxu0 0.0
        %869 = vmatpush1.msra.mxu0 0.0
        %870 = vmatprep.subr.mxu0 0.0
        %871 = vmatpush1.msra.mxu0 0.0
        %872 = vmatprep.subr.mxu0 0.0
        %873 = vmatpush1.msra.mxu0 0.0
        %874 = vmatprep.subr.mxu0 0.0
        %875 = vmatpush1.msra.mxu0 0.0
        %876 = vmatprep.subr.mxu0 0.0
        %877 = vmatpush1.msra.mxu0 0.0
        %878 = vmatprep.subr.mxu0 0.0
        %879 = vmatpush1.msra.mxu0 0.0
        %880 = vmatprep.subr.mxu0 0.0
        %881 = vmatpush1.msra.mxu0 0.0
        %882 = vmatprep.subr.mxu0 0.0
        %883 = vmatpush1.msra.mxu0 0.0
        %884 = vmatprep.subr.mxu0 0.0
        %885 = vmatpush1.msra.mxu0 0.0
        %886 = vmatprep.subr.mxu0 0.0
        %887 = vmatpush1.msra.mxu0 0.0
        %888 = vmatprep.subr.mxu0 0.0
        %889 = vmatpush1.msra.mxu0 0.0
        %890 = vmatprep.subr.mxu0 0.0
        %891 = vmatpush1.msra.mxu0 0.0
        %892 = vmatprep.subr.mxu0 0.0
        %893 = vmatpush1.msra.mxu0 0.0
        %894 = vmatprep.subr.mxu0 0.0
        %895 = vmatpush1.msra.mxu0 0.0
        %896 = vmatprep.subr.mxu0 0.0
        %897 = vmatpush1.msra.mxu0 0.0
        %898 = vmatprep.subr.mxu0 0.0
        %899 = vmatpush1.msra.mxu0 0.0
        %900 = vmatprep.subr.mxu0 0.0
        %901 = vmatpush1.msra.mxu0 0.0
        %902 = vmatprep.subr.mxu0 0.0
        %903 = vmatpush1.msra.mxu0 0.0
        %904 = vmatprep.subr.mxu0 0.0
        %905 = vmatpush1.msra.mxu0 0.0
        %906 = vmatprep.subr.mxu0 0.0
        %907 = vmatpush1.msra.mxu0 0.0
        %908 = vmatprep.subr.mxu0 0.0
        %909 = vmatpush1.msra.mxu0 0.0
        %910 = vmatprep.subr.mxu0 0.0
        %911 = vmatpush1.msra.mxu0 0.0
        %912 = vmatprep.subr.mxu0 0.0
        %913 = vmatpush1.msra.mxu0 0.0
        %914 = vmatprep.mubr.f32.mxu0 0.0
        %915 = vmatmul.mubr.f32.gmra.mrb[0].mxu0 %v827
        %v916 = vpop.f32.mrb[0].mxu0
        %v917 = vadd.f32 0.0, %v916
        %v918 = vpop.f32.mrb[0].mxu0
        %919 = vmatprep.mubr.f32.mxu0 0.0
        %920 = vmatmul.mubr.f32.gmra.mrb[0].mxu0 %v830
        %v921 = vpop.f32.mrb[0].mxu0
        %v922 = vadd.f32 0.0, %v921
        %v923 = vpop.f32.mrb[0].mxu0
        %924 = vmatprep.mubr.f32.mxu0 0.0
        %925 = vmatmul.mubr.f32.gmra.mrb[0].mxu0 %v833
        %v926 = vpop.f32.mrb[0].mxu0
        %v927 = vadd.f32 0.0, %v926
        %v928 = vpop.f32.mrb[0].mxu0
        %929 = vmatprep.mubr.f32.mxu0 0.0
        %930 = vmatmul.mubr.f32.gmra.mrb[0].mxu0 %v836
        %v931 = vpop.f32.mrb[0].mxu0
        %v932 = vadd.f32 0.0, %v931
        %v933 = vpop.f32.mrb[0].mxu0
        %934 = vmatprep.mubr.f32.mxu0 0.0
        %935 = vmatmul.mubr.f32.gmra.mrb[0].mxu0 %v839
        %v936 = vpop.f32.mrb[0].mxu0
        %v937 = vadd.f32 0.0, %v936
        %v938 = vpop.f32.mrb[0].mxu0
        %939 = vmatprep.mubr.f32.mxu0 0.0
        %940 = vmatmul.mubr.f32.gmra.mrb[0].mxu0 %v842
        %v941 = vpop.f32.mrb[0].mxu0
        %v942 = vadd.f32 0.0, %v941
        %v943 = vpop.f32.mrb[0].mxu0
        %944 = vmatprep.mubr.f32.mxu0 0.0
        %945 = vmatmul.mubr.f32.gmra.mrb[0].mxu0 %v845
        %v946 = vpop.f32.mrb[0].mxu0
        %v947 = vadd.f32 0.0, %v946
        %v948 = vpop.f32.mrb[0].mxu0
        %949 = vmatprep.mubr.f32.mxu0 0.0
        %950 = vmatmul.mubr.f32.gmra.mrb[0].mxu0 %v848
        %v951 = vpop.f32.mrb[0].mxu0
        %v952 = vadd.f32 0.0, %v951
        %v953 = vpop.f32.mrb[0].mxu0
        %954 = vdwg.mxu0
        %955 = vrot.lane.b32.xlu0 %v433, 64
        %v956 = vpop.permute.xlu0 %955
        %v958 = vmul.f32 %v917, %v956
        %v959 = vmul.f32 %v922, %v956
        %v960 = vmul.f32 %v927, %v956
        %v961 = vmul.f32 %v932, %v956
        %v962 = vmul.f32 %v937, %v956
        %v963 = vmul.f32 %v942, %v956
        %v964 = vmul.f32 %v947, %v956
        %v965 = vmul.f32 %v952, %v956
        %v966 = vsel %vm362, %v958, 0.0
        %v967 = vrot.slane %v966, 4
        %v968 = vadd.f32 %v966, %v967
        %v969 = vrot.slane %v968, 2
        %v970 = vadd.f32 %v968, %v969
        %v971 = vrot.slane %v970, 1
        %v972 = vadd.f32 %v970, %v971
        %v973 = vsel %vm362, %v959, 0.0
        %v974 = vrot.slane %v973, 4
        %v975 = vadd.f32 %v973, %v974
        %v976 = vrot.slane %v975, 2
        %v977 = vadd.f32 %v975, %v976
        %v978 = vrot.slane %v977, 1
        %v979 = vadd.f32 %v977, %v978
        %v980 = vsel %vm362, %v960, 0.0
        %v981 = vrot.slane %v980, 4
        %v982 = vadd.f32 %v980, %v981
        %v983 = vrot.slane %v982, 2
        %v984 = vadd.f32 %v982, %v983
        %v985 = vrot.slane %v984, 1
        %v986 = vadd.f32 %v984, %v985
        %v987 = vsel %vm362, %v961, 0.0
        %v988 = vrot.slane %v987, 4
        %v989 = vadd.f32 %v987, %v988
        %v990 = vrot.slane %v989, 2
        %v991 = vadd.f32 %v989, %v990
        %v992 = vrot.slane %v991, 1
        %v993 = vadd.f32 %v991, %v992
        %v994 = vsel %vm362, %v962, 0.0
        %v995 = vrot.slane %v994, 4
        %v996 = vadd.f32 %v994, %v995
        %v997 = vrot.slane %v996, 2
        %v998 = vadd.f32 %v996, %v997
        %v999 = vrot.slane %v998, 1
        %v1000 = vadd.f32 %v998, %v999
        %v1001 = vsel %vm362, %v963, 0.0
        %v1002 = vrot.slane %v1001, 4
        %v1003 = vadd.f32 %v1001, %v1002
        %v1004 = vrot.slane %v1003, 2
        %v1005 = vadd.f32 %v1003, %v1004
        %v1006 = vrot.slane %v1005, 1
        %v1007 = vadd.f32 %v1005, %v1006
        %v1008 = vsel %vm362, %v964, 0.0
        %v1009 = vrot.slane %v1008, 4
        %v1010 = vadd.f32 %v1008, %v1009
        %v1011 = vrot.slane %v1010, 2
        %v1012 = vadd.f32 %v1010, %v1011
        %v1013 = vrot.slane %v1012, 1
        %v1014 = vadd.f32 %v1012, %v1013
        %v1015 = vsel %vm362, %v965, 0.0
        %v1016 = vrot.slane %v1015, 4
        %v1017 = vadd.f32 %v1015, %v1016
        %v1018 = vrot.slane %v1017, 2
        %v1019 = vadd.f32 %v1017, %v1018
        %v1020 = vrot.slane %v1019, 1
        %v1021 = vadd.f32 %v1019, %v1020
        %v1022 = vld [vmem:[%s7] sm:$0x3f]
        %v1023 = vld [vmem:[#allocation5] sm:$0xff]
        %v1024 = vld [vmem:[#allocation5 + $0x8] sm:$0xff]
        %v1025 = vld [vmem:[#allocation5 + $0x10] sm:$0xff]
        %v1026 = vld [vmem:[#allocation5 + $0x18] sm:$0xff]
        %v1027 = vlaneseq
        %v1028 = vshrl.u32 %v1027, 7
        %v1029 = vsub.s32 0, %v1028
        %v1030 = vrot.slane %v1022, %v1029
        %vm1039 = vcmask 1041409
        %v1040 = vsel %vm1039, %v979, %v972
        %vm1041 = vcmask 1042434
        %v1042 = vsel %vm1041, %v986, %v1040
        %vm1043 = vcmask 1043459
        %v1044 = vsel %vm1043, %v993, %v1042
        %vm1045 = vcmask 1044484
        %v1046 = vsel %vm1045, %v1000, %v1044
        %vm1047 = vcmask 1045509
        %v1048 = vsel %vm1047, %v1007, %v1046
        %vm1049 = vcmask 1046534
        %v1050 = vsel %vm1049, %v1014, %v1048
        %vm1051 = vcmask 1047559
        %v1052 = vsel %vm1051, %v1021, %v1050
        %v1053 = vsel %vm362, %v1052, 0
        %1055 = vmatprep.subr.mxu0 0.0
        %1056 = vmatpush1.msra.mxu0 %v1023
        %1057 = vmatprep.subr.mxu0 0.0
        %1058 = vmatpush1.msra.mxu0 %v1024
        %1059 = vmatprep.subr.mxu0 0.0
        %1060 = vmatpush1.msra.mxu0 %v1025
        %1061 = vmatprep.subr.mxu0 0.0
        %1062 = vmatpush1.msra.mxu0 %v1026
        %1063 = vmatprep.subr.mxu0 0.0
        %1064 = vmatpush1.msra.mxu0 0.0
        %1065 = vmatprep.subr.mxu0 0.0
        %1066 = vmatpush1.msra.mxu0 0.0
        %1067 = vmatprep.subr.mxu0 0.0
        %1068 = vmatpush1.msra.mxu0 0.0
        %1069 = vmatprep.subr.mxu0 0.0
        %1070 = vmatpush1.msra.mxu0 0.0
        %1071 = vmatprep.subr.mxu0 0.0
        %1072 = vmatpush1.msra.mxu0 0.0
        %1073 = vmatprep.subr.mxu0 0.0
        %1074 = vmatpush1.msra.mxu0 0.0
        %1075 = vmatprep.subr.mxu0 0.0
        %1076 = vmatpush1.msra.mxu0 0.0
        %1077 = vmatprep.subr.mxu0 0.0
        %1078 = vmatpush1.msra.mxu0 0.0
        %1079 = vmatprep.subr.mxu0 0.0
        %1080 = vmatpush1.msra.mxu0 0.0
        %1081 = vmatprep.subr.mxu0 0.0
        %1082 = vmatpush1.msra.mxu0 0.0
        %1083 = vmatprep.subr.mxu0 0.0
        %1084 = vmatpush1.msra.mxu0 0.0
        %1085 = vmatprep.subr.mxu0 0.0
        %1086 = vmatpush1.msra.mxu0 0.0
        %1087 = vmatprep.subr.mxu0 0.0
        %1088 = vmatpush1.msra.mxu0 0.0
        %1089 = vmatprep.subr.mxu0 0.0
        %1090 = vmatpush1.msra.mxu0 0.0
        %1091 = vmatprep.subr.mxu0 0.0
        %1092 = vmatpush1.msra.mxu0 0.0
        %1093 = vmatprep.subr.mxu0 0.0
        %1094 = vmatpush1.msra.mxu0 0.0
        %1095 = vmatprep.subr.mxu0 0.0
        %1096 = vmatpush1.msra.mxu0 0.0
        %1097 = vmatprep.subr.mxu0 0.0
        %1098 = vmatpush1.msra.mxu0 0.0
        %1099 = vmatprep.subr.mxu0 0.0
        %1100 = vmatpush1.msra.mxu0 0.0
        %1101 = vmatprep.subr.mxu0 0.0
        %1102 = vmatpush1.msra.mxu0 0.0
        %1103 = vmatprep.subr.mxu0 0.0
        %1104 = vmatpush1.msra.mxu0 0.0
        %1105 = vmatprep.subr.mxu0 0.0
        %1106 = vmatpush1.msra.mxu0 0.0
        %1107 = vmatprep.subr.mxu0 0.0
        %1108 = vmatpush1.msra.mxu0 0.0
        %1109 = vmatprep.subr.mxu0 0.0
        %1110 = vmatpush1.msra.mxu0 0.0
        %1111 = vmatprep.subr.mxu0 0.0
        %1112 = vmatpush1.msra.mxu0 0.0
        %1113 = vmatprep.subr.mxu0 0.0
        %1114 = vmatpush1.msra.mxu0 0.0
        %1115 = vmatprep.subr.mxu0 0.0
        %1116 = vmatpush1.msra.mxu0 0.0
        %1117 = vmatprep.subr.mxu0 0.0
        %1118 = vmatpush1.msra.mxu0 0.0
        %1119 = vmatprep.mubr.f32.mxu0 0.0
        %1120 = vmatmul.mubr.f32.gmra.mrb[0].mxu0 %v1053
        %v1121 = vpop.f32.mrb[0].mxu0
        %v1122 = vadd.f32 %v1030, %v1121
        %v1123 = vpop.f32.mrb[0].mxu0
        %1124 = vdwg.mxu0
        %v1125 = vadd.f32 %v1122, %v350
        %v1126 = vsel %vm362, %v1125, 0.0
        %1127 = vadd.xlane.f32.xlu0 %v1126
        %v1128 = vpop.xlane.xlu0 %1127
        %v1129 = vrcp.pop 32.0
        %v1130 = vmul.f32 %v1128, %v1129
        %v1131 = vsub.f32 %v1125, %v1130
        %v1132 = vmul.f32 %v1131, %v1131
        %v1133 = vsel %vm362, %v1132, 0.0
        %1134 = vadd.xlane.f32.xlu0 %v1133
        %v1135 = vpop.xlane.xlu0 %1134
        %v1136 = vmul.f32 %v1135, %v1129
        %v1137 = vadd.f32 %v1136, 1e-05
        %v1138 = vrsqrt.pop %v1137
        %v1139 = vmul.f32 %v1131, %v1138
        %v1140 = vlaneseq
        %v1141 = vshrl.u32 %v1140, 7
        %v1142 = vsub.s32 1, %v1141
        %v1143 = vrot.slane %v1022, %v1142
        %v1144 = vmul.f32 %v1139, %v1143
        %v1145 = vlaneseq
        %v1146 = vshrl.u32 %v1145, 7
        %v1147 = vsub.s32 2, %v1146
        %v1148 = vrot.slane %v1022, %v1147
        %v1149 = vadd.f32 %v1144, %v1148
        %v1150 = vld [vmem:[#allocation7] sm:$0xff]
        %v1151 = vld [vmem:[#allocation7 + $0x8] sm:$0xff]
        %v1152 = vld [vmem:[#allocation7 + $0x10] sm:$0xff]
        %v1153 = vld [vmem:[#allocation7 + $0x18] sm:$0xff]
        %v1154 = vlaneseq
        %v1155 = vshrl.u32 %v1154, 7
        %v1156 = vsub.s32 3, %v1155
        %v1157 = vrot.slane %v1022, %v1156
        %v1159 = vsel %vm362, %v1149, 0
        %1161 = vmatprep.subr.mxu0 0.0
        %1162 = vmatpush1.msra.mxu0 %v1150
        %1163 = vmatprep.subr.mxu0 0.0
        %1164 = vmatpush1.msra.mxu0 %v1151
        %1165 = vmatprep.subr.mxu0 0.0
        %1166 = vmatpush1.msra.mxu0 %v1152
        %1167 = vmatprep.subr.mxu0 0.0
        %1168 = vmatpush1.msra.mxu0 %v1153
        %1169 = vmatprep.subr.mxu0 0.0
        %1170 = vmatpush1.msra.mxu0 0.0
        %1171 = vmatprep.subr.mxu0 0.0
        %1172 = vmatpush1.msra.mxu0 0.0
        %1173 = vmatprep.subr.mxu0 0.0
        %1174 = vmatpush1.msra.mxu0 0.0
        %1175 = vmatprep.subr.mxu0 0.0
        %1176 = vmatpush1.msra.mxu0 0.0
        %1177 = vmatprep.subr.mxu0 0.0
        %1178 = vmatpush1.msra.mxu0 0.0
        %1179 = vmatprep.subr.mxu0 0.0
        %1180 = vmatpush1.msra.mxu0 0.0
        %1181 = vmatprep.subr.mxu0 0.0
        %1182 = vmatpush1.msra.mxu0 0.0
        %1183 = vmatprep.subr.mxu0 0.0
        %1184 = vmatpush1.msra.mxu0 0.0
        %1185 = vmatprep.subr.mxu0 0.0
        %1186 = vmatpush1.msra.mxu0 0.0
        %1187 = vmatprep.subr.mxu0 0.0
        %1188 = vmatpush1.msra.mxu0 0.0
        %1189 = vmatprep.subr.mxu0 0.0
        %1190 = vmatpush1.msra.mxu0 0.0
        %1191 = vmatprep.subr.mxu0 0.0
        %1192 = vmatpush1.msra.mxu0 0.0
        %1193 = vmatprep.subr.mxu0 0.0
        %1194 = vmatpush1.msra.mxu0 0.0
        %1195 = vmatprep.subr.mxu0 0.0
        %1196 = vmatpush1.msra.mxu0 0.0
        %1197 = vmatprep.subr.mxu0 0.0
        %1198 = vmatpush1.msra.mxu0 0.0
        %1199 = vmatprep.subr.mxu0 0.0
        %1200 = vmatpush1.msra.mxu0 0.0
        %1201 = vmatprep.subr.mxu0 0.0
        %1202 = vmatpush1.msra.mxu0 0.0
        %1203 = vmatprep.subr.mxu0 0.0
        %1204 = vmatpush1.msra.mxu0 0.0
        %1205 = vmatprep.subr.mxu0 0.0
        %1206 = vmatpush1.msra.mxu0 0.0
        %1207 = vmatprep.subr.mxu0 0.0
        %1208 = vmatpush1.msra.mxu0 0.0
        %1209 = vmatprep.subr.mxu0 0.0
        %1210 = vmatpush1.msra.mxu0 0.0
        %1211 = vmatprep.subr.mxu0 0.0
        %1212 = vmatpush1.msra.mxu0 0.0
        %1213 = vmatprep.subr.mxu0 0.0
        %1214 = vmatpush1.msra.mxu0 0.0
        %1215 = vmatprep.subr.mxu0 0.0
        %1216 = vmatpush1.msra.mxu0 0.0
        %1217 = vmatprep.subr.mxu0 0.0
        %1218 = vmatpush1.msra.mxu0 0.0
        %1219 = vmatprep.subr.mxu0 0.0
        %1220 = vmatpush1.msra.mxu0 0.0
        %1221 = vmatprep.subr.mxu0 0.0
        %1222 = vmatpush1.msra.mxu0 0.0
        %1223 = vmatprep.subr.mxu0 0.0
        %1224 = vmatpush1.msra.mxu0 0.0
        %1225 = vmatprep.mubr.f32.mxu0 0.0
        %1226 = vmatmul.mubr.f32.gmra.mrb[0].mxu0 %v1159
        %v1227 = vpop.f32.mrb[0].mxu0
        %v1228 = vadd.f32 %v1157, %v1227
        %v1229 = vpop.f32.mrb[0].mxu0
        %1230 = vdwg.mxu0
        %v1231 = vmul.f32 %v1228, 0.5
        %v1232 = vrcp.pop 1.4142135
        %v1233 = vmul.f32 %v1228, %v1232
        %v1234 = verf.f32.pop %v1233
        %v1235 = vadd.f32 %v1234, 1.0
        %v1236 = vmul.f32 %v1231, %v1235
        %v1237 = vadd.f32 %v1236, %v1149
        %v1238 = vsel %vm362, %v1237, 0.0
        %1239 = vadd.xlane.f32.xlu0 %v1238
        %v1240 = vpop.xlane.xlu0 %1239
        %v1241 = vmul.f32 %v1240, %v1129
        %v1242 = vsub.f32 %v1237, %v1241
        %v1243 = vmul.f32 %v1242, %v1242
        %v1244 = vsel %vm362, %v1243, 0.0
        %1245 = vadd.xlane.f32.xlu0 %v1244
        %v1246 = vpop.xlane.xlu0 %1245
        %v1247 = vmul.f32 %v1246, %v1129
        %v1248 = vadd.f32 %v1247, 1e-05
        %v1249 = vrsqrt.pop %v1248
        %v1250 = vmul.f32 %v1242, %v1249
        %v1251 = vlaneseq
        %v1252 = vshrl.u32 %v1251, 7
        %v1253 = vsub.s32 4, %v1252
        %v1254 = vrot.slane %v1022, %v1253
        %v1255 = vmul.f32 %v1250, %v1254
        %v1256 = vlaneseq
        %v1257 = vshrl.u32 %v1256, 7
        %v1258 = vsub.s32 5, %v1257
        %v1259 = vrot.slane %v1022, %v1258
        %v1260 = vadd.f32 %v1255, %v1259
        %1261 = vst.msk [vmem:[%s349] sm:$0xff] %vm362, %v1260
        %s1262 = sand.u32 %s207, 1
        %s1263 = scalar_lea.sflag [#allocation4], %s1262
        %s1264 = sand.u32 %s207, 1
        %s1265 = smul.addr %s1264, 8
        %s1266 = scalar_lea.vmem [#allocation8], %s1265
        // Predicated region
        $region65: #{tpu_custom_call.1} parent=51 // pred_check
          %p1267 = pneg %p217
        $region66: #{tpu_custom_call.1} parent=51 // pred_check_branch
          %1269 = sbr.rel (%p1267) target = $region68
        $region67: #{tpu_custom_call.1} parent=51 // pred_region
          %s1271 = ssub.s32 128, 128
          %1272 = vsyncadd %s1263, %s1271
          %s1273 = smul.addr %s26, 128
          %s1274 = scalar_lea.hbm %s8, %s1273
          %s1276 = sshll.u32 %s1266, 4
          %s1277 = int_to_ptr.vmem [resolvable:$true] %s1276
          %1279 = dma.vmem_to_hbm [thread:$0]  %s1277, 128, %s1274, %s1263
        $region68: #{tpu_custom_call.1} parent=51 // pred_fallthru
          _
      $region52: #{tpu_custom_call.1} parent=5 // pred_fallthru
        _
      %p1280 = scmp.le.s32.totalorder 2, %s21
      // Predicated region
      $region69: #{tpu_custom_call.1} parent=5 // pred_check
        %p1281 = pneg %p1280
      $region70: #{tpu_custom_call.1} parent=5 // pred_check_branch
        %1283 = sbr.rel (%p1281) target = $region72
      $region71: #{tpu_custom_call.1} parent=5 // pred_region
        %s1284 = ssub.s32 %s21, 2
        // Predicated region
        $region73: #{tpu_custom_call.1} parent=71 // pred_check
          %p1285 = pneg %p223
        $region74: #{tpu_custom_call.1} parent=71 // pred_check_branch
          %1287 = sbr.rel (%p1285) target = $region76
        $region75: #{tpu_custom_call.1} parent=71 // pred_region
          %s1288 = sand.u32 %s208, 1
          %s1289 = scalar_lea.sflag [#allocation4], %s1288
          %s1290 = sand.u32 %s208, 1
          %s1291 = smul.addr %s1290, 8
          %s1292 = scalar_lea.vmem [#allocation8], %s1291
          %1293 = dma.done %s1289, 128
        $region76: #{tpu_custom_call.1} parent=71 // pred_fallthru
          _
      $region72: #{tpu_custom_call.1} parent=5 // pred_fallthru
        _
    $region6: #{tpu_custom_call.1} parent=1 // loop_footer
      %s25 = sadd.s32 1, %s21
    $region7: #{tpu_custom_call.1} parent=1 // loop_footer_branch
      %20 = sbr.rel target = $region3
    $region8: #{tpu_custom_call.1} parent=1 // loop_exit
      _
    %1294 = vsyncpa [#allocation3], 1
    %s1295 = scalar_lea.sflag [#allocation3], 1
    %1296 = vsyncpa %s1295, 1
    %1297 = vsyncpa [#allocation6], 1
    %1298 = vsyncpa [#allocation4], 1
    %s1299 = scalar_lea.sflag [#allocation4], 1
    %1300 = vsyncpa %s1299, 1

</llo_original>
